<compile_context>
chip_gen: v7x
topology: tpu7x:2x2x1
jax: 0.10.0
libtpu: 0.0.40
codegen_flags: <defaults>
</compile_context>

<pallas_src>
import jax
import jax.numpy as jnp
from jax.experimental import pallas as pl
from jax.experimental.pallas import tpu as pltpu

_ISSUE_UNROLL = 8   # static partial unroll of the DMA-issue loop


def mf_classic_kernel(uidx_ref, iidx_ref,          # scalar-prefetch indices (SMEM)
                      glob_ref,                    # (1, 1) f32 in SMEM
                      utbl_ref, itbl_ref,          # augmented tables in HBM (ANY)
                      out_ref,                     # (1, TB) f32 lane-dense block
                      ubuf, ibuf, sem):            # (2,TB,DP) VMEM x2, DMA sems (2,2)
    TB = out_ref.shape[1]
    t = pl.program_id(0)
    slot = t & 1
    glob = glob_ref[0, 0]                          # scalar read before any DMA wait

    def issue_tile(tile, into_slot):
        base = tile * TB
        @pl.loop(0, TB // _ISSUE_UNROLL)
        def _issue(rr):
            r0 = rr * _ISSUE_UNROLL
            for j in range(_ISSUE_UNROLL):         # static partial unroll
                r = r0 + j
                u = uidx_ref[base + r]
                i = iidx_ref[base + r]
                pltpu.make_async_copy(
                    utbl_ref.at[pl.ds(u, 1), :],
                    ubuf.at[into_slot, pl.ds(r, 1), :],
                    sem.at[into_slot, 0]).start()
                pltpu.make_async_copy(
                    itbl_ref.at[pl.ds(i, 1), :],
                    ibuf.at[into_slot, pl.ds(r, 1), :],
                    sem.at[into_slot, 1]).start()

    # Prime the pipeline on the first grid step.
    @pl.when(t == 0)
    def _prime():
        issue_tile(0, 0)

    # Prefetch next tile's rows into the other slot before draining this one.
    @pl.when(t + 1 < pl.num_programs(0))
    def _prefetch_next():
        issue_tile(t + 1, (t + 1) & 1)

    # Single wait per semaphore: descriptor bytes (TB*DP*4) equal the sum of the
    # TB row copies issued to that semaphore, and the descriptor names the VMEM
    # buffer the compute reads, so the dependence is tracked.
    pltpu.make_async_copy(ubuf.at[slot], ubuf.at[slot], sem.at[slot, 0]).wait()
    pltpu.make_async_copy(ibuf.at[slot], ibuf.at[slot], sem.at[slot, 1]).wait()

    # VPU product + XLU row-reduce: intx + user_bias + item_bias (+ glob).
    prod = ubuf[slot] * ibuf[slot]                 # (TB, DP) f32
    s = jnp.sum(prod, axis=1)                      # (TB,)
    out_ref[...] = (glob + s).reshape(1, TB)       # lane-dense (1, TB) store


def build_augmented_tables(user_bas_w, item_bas_w, user_vec_w, item_vec_w):
    """Build the augmented, lane-padded parameter layout ONCE (not per call).

    Columns: user row = [user_vec, user_bias, 1.0, 0...0]
             item row = [item_vec, 1.0, item_bias, 0...0]
    so rowwise product+sum gives  intx + user_bias + item_bias.
    """
    n_users, dim = user_vec_w.shape
    n_items = item_vec_w.shape[0]
    dp = ((dim + 2 + 127) // 128) * 128
    utbl = jnp.zeros((n_users, dp), jnp.float32)
    utbl = utbl.at[:, :dim].set(user_vec_w.astype(jnp.float32))
    utbl = utbl.at[:, dim].set(user_bas_w[:, 0].astype(jnp.float32))
    utbl = utbl.at[:, dim + 1].set(1.0)
    itbl = jnp.zeros((n_items, dp), jnp.float32)
    itbl = itbl.at[:, :dim].set(item_vec_w.astype(jnp.float32))
    itbl = itbl.at[:, dim].set(1.0)
    itbl = itbl.at[:, dim + 1].set(item_bas_w[:, 0].astype(jnp.float32))
    return utbl, itbl


def mf_classic_forward(user_idx, item_idx, glob_bas, utbl, itbl, *, tb=None):
    n_users, dp = utbl.shape
    n_items = itbl.shape[0]
    B = user_idx.shape[0]

    if tb is None:
        # Big tiles amortize per-step overhead; clamp to the (128-rounded) batch.
        tb = min(512, max(128, ((B + 127) // 128) * 128))
    assert tb % _ISSUE_UNROLL == 0

    num_tiles = pl.cdiv(B, tb)
    b_pad = num_tiles * tb

    # Clamp indices (defined OOB semantics) and pad batch to a tile multiple.
    uidx = jnp.pad(jnp.clip(user_idx.astype(jnp.int32), 0, n_users - 1),
                   (0, b_pad - B))
    iidx = jnp.pad(jnp.clip(item_idx.astype(jnp.int32), 0, n_items - 1),
                   (0, b_pad - B))

    grid_spec = pltpu.PrefetchScalarGridSpec(
        num_scalar_prefetch=2,                     # uidx, iidx -> SMEM
        grid=(num_tiles,),
        in_specs=[
            pl.BlockSpec(memory_space=pltpu.MemorySpace.SMEM),  # glob_bas
            pl.BlockSpec(memory_space=pl.ANY),                  # user table (HBM)
            pl.BlockSpec(memory_space=pl.ANY),                  # item table (HBM)
        ],
        out_specs=pl.BlockSpec((1, tb), lambda t, uidx, iidx: (t, 0)),
        scratch_shapes=[
            pltpu.VMEM((2, tb, dp), jnp.float32),  # double-buffered user rows
            pltpu.VMEM((2, tb, dp), jnp.float32),  # double-buffered item rows
            pltpu.SemaphoreType.DMA((2, 2)),       # [slot, {user,item}]
        ],
    )

    score = pl.pallas_call(
        mf_classic_kernel,
        out_shape=jax.ShapeDtypeStruct((num_tiles, tb), jnp.float32),
        grid_spec=grid_spec,
        compiler_params=pltpu.CompilerParams(
            # "arbitrary": the cross-step double buffer carries state between
            # grid iterations, so the axis must run sequentially on one core.
            dimension_semantics=("arbitrary",)),
    )(uidx, iidx, glob_bas.astype(jnp.float32), utbl, itbl)

    return score.reshape(b_pad)[:B]                # matches PyTorch .squeeze() -> (B,)


def reference_forward(user_idx, item_idx, glob_bas,
                      user_bas_w, item_bas_w, user_vec_w, item_vec_w):
    uv = user_vec_w[user_idx]
    iv = item_vec_w[item_idx]
    ub = user_bas_w[user_idx, 0]
    ib = item_bas_w[item_idx, 0]
    intx = (uv * iv).sum(axis=1)
    return glob_bas[0, 0] + ub + ib + intx


if __name__ == "__main__":
    # Small synthetic config consistent with the module.
    n_users, n_items, dim, batch = 16, 24, 32, 8

    key = jax.random.PRNGKey(0)
    k1, k2, k3, k4, k5, k6, k7 = jax.random.split(key, 7)

    glob_bas   = jax.random.normal(k1, (1, 1), dtype=jnp.float32)
    user_bas_w = jax.random.normal(k2, (n_users, 1), dtype=jnp.float32) * 0.1
    item_bas_w = jax.random.normal(k3, (n_items, 1), dtype=jnp.float32) * 0.1
    user_vec_w = jax.random.normal(k4, (n_users, dim), dtype=jnp.float32) * 0.1
    item_vec_w = jax.random.normal(k5, (n_items, dim), dtype=jnp.float32) * 0.1

    user_idx = jax.random.randint(k6, (batch,), 0, n_users, dtype=jnp.int32)
    item_idx = jax.random.randint(k7, (batch,), 0, n_items, dtype=jnp.int32)

    # Augmented tables are built once, outside the hot path.
    utbl, itbl = build_augmented_tables(user_bas_w, item_bas_w,
                                        user_vec_w, item_vec_w)

    score = mf_classic_forward(user_idx, item_idx, glob_bas, utbl, itbl)
    score = jax.block_until_ready(score)

    ref = reference_forward(user_idx, item_idx, glob_bas,
                            user_bas_w, item_bas_w, user_vec_w, item_vec_w)
    assert score.shape == (batch,)
    assert jnp.allclose(score, ref, atol=1e-5, rtol=1e-5), (score, ref)

    print("KERNEL_OK")
</pallas_src>

<mosaic_0001>
module attributes {stable_mosaic.version = 11 : i64} {
  func.func @mf_classic_kernel(%arg0: i32, %arg1: memref<128xi32, #tpu.memory_space<smem>>, %arg2: memref<128xi32, #tpu.memory_space<smem>>, %arg3: memref<1x1xf32, #tpu.memory_space<smem>>, %arg4: memref<16x128xf32, #tpu.memory_space<any>>, %arg5: memref<24x128xf32, #tpu.memory_space<any>>, %arg6: memref<1x128xf32, #tpu.memory_space<vmem>>, %arg7: memref<2x128x128xf32, #tpu.memory_space<vmem>>, %arg8: memref<2x128x128xf32, #tpu.memory_space<vmem>>, %arg9: memref<2x2x!tpu.dma_semaphore, #tpu.memory_space<semaphore_mem>>) attributes {dimension_semantics = [#tpu.dimension_semantics<arbitrary>], iteration_bounds = array<i64: 1>, scalar_prefetch = 2 : i64, scratch_operands = 3 : i64, tpu.core_type = #tpu.core_type<tc>, window_params = [{transform_indices = @transform_0, window_bounds = array<i64: 1, 1>}, {}, {}, {transform_indices = @transform_3, window_bounds = array<i64: 1, 128>}]} {
    %c1_i32 = arith.constant 1 : i32
    %0 = arith.andi %arg0, %c1_i32 : i32
    %c0 = arith.constant 0 : index
    %c0_0 = arith.constant 0 : index
    %1 = memref.load %arg3[%c0, %c0_0] : memref<1x1xf32, #tpu.memory_space<smem>>
    %c0_i32 = arith.constant 0 : i32
    %2 = arith.cmpi eq, %arg0, %c0_i32 : i32
    %3 = arith.extui %2 : i1 to i32
    %c0_i32_1 = arith.constant 0 : i32
    %4 = arith.cmpi ne, %3, %c0_i32_1 : i32
    scf.if %4 {
      %c0_i32_21 = arith.constant 0 : i32
      %c16_i32 = arith.constant 16 : i32
      %33 = arith.addi %c0_i32_21, %c16_i32 : i32
      %c1_i32_22 = arith.constant 1 : i32
      scf.for %arg10 = %c0_i32_21 to %33 step %c1_i32_22  : i32 {
        %c1_i32_24 = arith.constant 1 : i32
        %34 = arith.muli %arg10, %c1_i32_24 : i32
        %c0_i32_25 = arith.constant 0 : i32
        %35 = arith.addi %c0_i32_25, %34 : i32
        %c8_i32 = arith.constant 8 : i32
        %36 = arith.muli %35, %c8_i32 : i32
        %c0_i32_26 = arith.constant 0 : i32
        %37 = arith.addi %36, %c0_i32_26 : i32
        %c0_i32_27 = arith.constant 0 : i32
        %38 = arith.addi %c0_i32_27, %37 : i32
        %39 = arith.index_cast %38 : i32 to index
        %40 = memref.load %arg1[%39] : memref<128xi32, #tpu.memory_space<smem>>
        %c0_i32_28 = arith.constant 0 : i32
        %41 = arith.addi %c0_i32_28, %37 : i32
        %42 = arith.index_cast %41 : i32 to index
        %43 = memref.load %arg2[%42] : memref<128xi32, #tpu.memory_space<smem>>
        %c0_i32_29 = arith.constant 0 : i32
        %c0_i32_30 = arith.constant 0 : i32
        %c0_i32_31 = arith.constant 0 : i32
        %c0_i32_32 = arith.constant 0 : i32
        %44 = tpu.memref_slice %arg4[%40, %c0_i32_32] : memref<16x128xf32, #tpu.memory_space<any>> -> memref<1x128xf32, #tpu.memory_space<any>>
        %c0_i32_33 = arith.constant 0 : i32
        %45 = tpu.memref_slice %arg7[%c0_i32_29, %37, %c0_i32_33] : memref<2x128x128xf32, #tpu.memory_space<vmem>> -> memref<1x1x128xf32, #tpu.memory_space<vmem>>
        %46 = tpu.memref_squeeze %45 : memref<1x1x128xf32, #tpu.memory_space<vmem>> -> memref<1x128xf32, #tpu.memory_space<vmem>>
        %47 = tpu.memref_slice %arg9[%c0_i32_30, %c0_i32_31] : memref<2x2x!tpu.dma_semaphore, #tpu.memory_space<semaphore_mem>> -> memref<1x1x!tpu.dma_semaphore, #tpu.memory_space<semaphore_mem>>
        %48 = tpu.memref_squeeze %47 : memref<1x1x!tpu.dma_semaphore, #tpu.memory_space<semaphore_mem>> -> memref<!tpu.dma_semaphore, #tpu.memory_space<semaphore_mem>>
        tpu.enqueue_dma source(%44 : memref<1x128xf32, #tpu.memory_space<any>>) target(%46 : memref<1x128xf32, #tpu.memory_space<vmem>>) target_semaphore(%48 : memref<!tpu.dma_semaphore, #tpu.memory_space<semaphore_mem>>)
        %c0_i32_34 = arith.constant 0 : i32
        %c0_i32_35 = arith.constant 0 : i32
        %c1_i32_36 = arith.constant 1 : i32
        %c0_i32_37 = arith.constant 0 : i32
        %49 = tpu.memref_slice %arg5[%43, %c0_i32_37] : memref<24x128xf32, #tpu.memory_space<any>> -> memref<1x128xf32, #tpu.memory_space<any>>
        %c0_i32_38 = arith.constant 0 : i32
        %50 = tpu.memref_slice %arg8[%c0_i32_34, %37, %c0_i32_38] : memref<2x128x128xf32, #tpu.memory_space<vmem>> -> memref<1x1x128xf32, #tpu.memory_space<vmem>>
        %51 = tpu.memref_squeeze %50 : memref<1x1x128xf32, #tpu.memory_space<vmem>> -> memref<1x128xf32, #tpu.memory_space<vmem>>
        %52 = tpu.memref_slice %arg9[%c0_i32_35, %c1_i32_36] : memref<2x2x!tpu.dma_semaphore, #tpu.memory_space<semaphore_mem>> -> memref<1x1x!tpu.dma_semaphore, #tpu.memory_space<semaphore_mem>>
        %53 = tpu.memref_squeeze %52 : memref<1x1x!tpu.dma_semaphore, #tpu.memory_space<semaphore_mem>> -> memref<!tpu.dma_semaphore, #tpu.memory_space<semaphore_mem>>
        tpu.enqueue_dma source(%49 : memref<1x128xf32, #tpu.memory_space<any>>) target(%51 : memref<1x128xf32, #tpu.memory_space<vmem>>) target_semaphore(%53 : memref<!tpu.dma_semaphore, #tpu.memory_space<semaphore_mem>>)
        %c1_i32_39 = arith.constant 1 : i32
        %54 = arith.addi %36, %c1_i32_39 : i32
        %c0_i32_40 = arith.constant 0 : i32
        %55 = arith.addi %c0_i32_40, %54 : i32
        %56 = arith.index_cast %55 : i32 to index
        %57 = memref.load %arg1[%56] : memref<128xi32, #tpu.memory_space<smem>>
        %c0_i32_41 = arith.constant 0 : i32
        %58 = arith.addi %c0_i32_41, %54 : i32
        %59 = arith.index_cast %58 : i32 to index
        %60 = memref.load %arg2[%59] : memref<128xi32, #tpu.memory_space<smem>>
        %c0_i32_42 = arith.constant 0 : i32
        %c0_i32_43 = arith.constant 0 : i32
        %c0_i32_44 = arith.constant 0 : i32
        %c0_i32_45 = arith.constant 0 : i32
        %61 = tpu.memref_slice %arg4[%57, %c0_i32_45] : memref<16x128xf32, #tpu.memory_space<any>> -> memref<1x128xf32, #tpu.memory_space<any>>
        %c0_i32_46 = arith.constant 0 : i32
        %62 = tpu.memref_slice %arg7[%c0_i32_42, %54, %c0_i32_46] : memref<2x128x128xf32, #tpu.memory_space<vmem>> -> memref<1x1x128xf32, #tpu.memory_space<vmem>>
        %63 = tpu.memref_squeeze %62 : memref<1x1x128xf32, #tpu.memory_space<vmem>> -> memref<1x128xf32, #tpu.memory_space<vmem>>
        %64 = tpu.memref_slice %arg9[%c0_i32_43, %c0_i32_44] : memref<2x2x!tpu.dma_semaphore, #tpu.memory_space<semaphore_mem>> -> memref<1x1x!tpu.dma_semaphore, #tpu.memory_space<semaphore_mem>>
        %65 = tpu.memref_squeeze %64 : memref<1x1x!tpu.dma_semaphore, #tpu.memory_space<semaphore_mem>> -> memref<!tpu.dma_semaphore, #tpu.memory_space<semaphore_mem>>
        tpu.enqueue_dma source(%61 : memref<1x128xf32, #tpu.memory_space<any>>) target(%63 : memref<1x128xf32, #tpu.memory_space<vmem>>) target_semaphore(%65 : memref<!tpu.dma_semaphore, #tpu.memory_space<semaphore_mem>>)
        %c0_i32_47 = arith.constant 0 : i32
        %c0_i32_48 = arith.constant 0 : i32
        %c1_i32_49 = arith.constant 1 : i32
        %c0_i32_50 = arith.constant 0 : i32
        %66 = tpu.memref_slice %arg5[%60, %c0_i32_50] : memref<24x128xf32, #tpu.memory_space<any>> -> memref<1x128xf32, #tpu.memory_space<any>>
        %c0_i32_51 = arith.constant 0 : i32
        %67 = tpu.memref_slice %arg8[%c0_i32_47, %54, %c0_i32_51] : memref<2x128x128xf32, #tpu.memory_space<vmem>> -> memref<1x1x128xf32, #tpu.memory_space<vmem>>
        %68 = tpu.memref_squeeze %67 : memref<1x1x128xf32, #tpu.memory_space<vmem>> -> memref<1x128xf32, #tpu.memory_space<vmem>>
        %69 = tpu.memref_slice %arg9[%c0_i32_48, %c1_i32_49] : memref<2x2x!tpu.dma_semaphore, #tpu.memory_space<semaphore_mem>> -> memref<1x1x!tpu.dma_semaphore, #tpu.memory_space<semaphore_mem>>
        %70 = tpu.memref_squeeze %69 : memref<1x1x!tpu.dma_semaphore, #tpu.memory_space<semaphore_mem>> -> memref<!tpu.dma_semaphore, #tpu.memory_space<semaphore_mem>>
        tpu.enqueue_dma source(%66 : memref<1x128xf32, #tpu.memory_space<any>>) target(%68 : memref<1x128xf32, #tpu.memory_space<vmem>>) target_semaphore(%70 : memref<!tpu.dma_semaphore, #tpu.memory_space<semaphore_mem>>)
        %c2_i32 = arith.constant 2 : i32
        %71 = arith.addi %36, %c2_i32 : i32
        %c0_i32_52 = arith.constant 0 : i32
        %72 = arith.addi %c0_i32_52, %71 : i32
        %73 = arith.index_cast %72 : i32 to index
        %74 = memref.load %arg1[%73] : memref<128xi32, #tpu.memory_space<smem>>
        %c0_i32_53 = arith.constant 0 : i32
        %75 = arith.addi %c0_i32_53, %71 : i32
        %76 = arith.index_cast %75 : i32 to index
        %77 = memref.load %arg2[%76] : memref<128xi32, #tpu.memory_space<smem>>
        %c0_i32_54 = arith.constant 0 : i32
        %c0_i32_55 = arith.constant 0 : i32
        %c0_i32_56 = arith.constant 0 : i32
        %c0_i32_57 = arith.constant 0 : i32
        %78 = tpu.memref_slice %arg4[%74, %c0_i32_57] : memref<16x128xf32, #tpu.memory_space<any>> -> memref<1x128xf32, #tpu.memory_space<any>>
        %c0_i32_58 = arith.constant 0 : i32
        %79 = tpu.memref_slice %arg7[%c0_i32_54, %71, %c0_i32_58] : memref<2x128x128xf32, #tpu.memory_space<vmem>> -> memref<1x1x128xf32, #tpu.memory_space<vmem>>
        %80 = tpu.memref_squeeze %79 : memref<1x1x128xf32, #tpu.memory_space<vmem>> -> memref<1x128xf32, #tpu.memory_space<vmem>>
        %81 = tpu.memref_slice %arg9[%c0_i32_55, %c0_i32_56] : memref<2x2x!tpu.dma_semaphore, #tpu.memory_space<semaphore_mem>> -> memref<1x1x!tpu.dma_semaphore, #tpu.memory_space<semaphore_mem>>
        %82 = tpu.memref_squeeze %81 : memref<1x1x!tpu.dma_semaphore, #tpu.memory_space<semaphore_mem>> -> memref<!tpu.dma_semaphore, #tpu.memory_space<semaphore_mem>>
        tpu.enqueue_dma source(%78 : memref<1x128xf32, #tpu.memory_space<any>>) target(%80 : memref<1x128xf32, #tpu.memory_space<vmem>>) target_semaphore(%82 : memref<!tpu.dma_semaphore, #tpu.memory_space<semaphore_mem>>)
        %c0_i32_59 = arith.constant 0 : i32
        %c0_i32_60 = arith.constant 0 : i32
        %c1_i32_61 = arith.constant 1 : i32
        %c0_i32_62 = arith.constant 0 : i32
        %83 = tpu.memref_slice %arg5[%77, %c0_i32_62] : memref<24x128xf32, #tpu.memory_space<any>> -> memref<1x128xf32, #tpu.memory_space<any>>
        %c0_i32_63 = arith.constant 0 : i32
        %84 = tpu.memref_slice %arg8[%c0_i32_59, %71, %c0_i32_63] : memref<2x128x128xf32, #tpu.memory_space<vmem>> -> memref<1x1x128xf32, #tpu.memory_space<vmem>>
        %85 = tpu.memref_squeeze %84 : memref<1x1x128xf32, #tpu.memory_space<vmem>> -> memref<1x128xf32, #tpu.memory_space<vmem>>
        %86 = tpu.memref_slice %arg9[%c0_i32_60, %c1_i32_61] : memref<2x2x!tpu.dma_semaphore, #tpu.memory_space<semaphore_mem>> -> memref<1x1x!tpu.dma_semaphore, #tpu.memory_space<semaphore_mem>>
        %87 = tpu.memref_squeeze %86 : memref<1x1x!tpu.dma_semaphore, #tpu.memory_space<semaphore_mem>> -> memref<!tpu.dma_semaphore, #tpu.memory_space<semaphore_mem>>
        tpu.enqueue_dma source(%83 : memref<1x128xf32, #tpu.memory_space<any>>) target(%85 : memref<1x128xf32, #tpu.memory_space<vmem>>) target_semaphore(%87 : memref<!tpu.dma_semaphore, #tpu.memory_space<semaphore_mem>>)
        %c3_i32 = arith.constant 3 : i32
        %88 = arith.addi %36, %c3_i32 : i32
        %c0_i32_64 = arith.constant 0 : i32
        %89 = arith.addi %c0_i32_64, %88 : i32
        %90 = arith.index_cast %89 : i32 to index
        %91 = memref.load %arg1[%90] : memref<128xi32, #tpu.memory_space<smem>>
        %c0_i32_65 = arith.constant 0 : i32
        %92 = arith.addi %c0_i32_65, %88 : i32
        %93 = arith.index_cast %92 : i32 to index
        %94 = memref.load %arg2[%93] : memref<128xi32, #tpu.memory_space<smem>>
        %c0_i32_66 = arith.constant 0 : i32
        %c0_i32_67 = arith.constant 0 : i32
        %c0_i32_68 = arith.constant 0 : i32
        %c0_i32_69 = arith.constant 0 : i32
        %95 = tpu.memref_slice %arg4[%91, %c0_i32_69] : memref<16x128xf32, #tpu.memory_space<any>> -> memref<1x128xf32, #tpu.memory_space<any>>
        %c0_i32_70 = arith.constant 0 : i32
        %96 = tpu.memref_slice %arg7[%c0_i32_66, %88, %c0_i32_70] : memref<2x128x128xf32, #tpu.memory_space<vmem>> -> memref<1x1x128xf32, #tpu.memory_space<vmem>>
        %97 = tpu.memref_squeeze %96 : memref<1x1x128xf32, #tpu.memory_space<vmem>> -> memref<1x128xf32, #tpu.memory_space<vmem>>
        %98 = tpu.memref_slice %arg9[%c0_i32_67, %c0_i32_68] : memref<2x2x!tpu.dma_semaphore, #tpu.memory_space<semaphore_mem>> -> memref<1x1x!tpu.dma_semaphore, #tpu.memory_space<semaphore_mem>>
        %99 = tpu.memref_squeeze %98 : memref<1x1x!tpu.dma_semaphore, #tpu.memory_space<semaphore_mem>> -> memref<!tpu.dma_semaphore, #tpu.memory_space<semaphore_mem>>
        tpu.enqueue_dma source(%95 : memref<1x128xf32, #tpu.memory_space<any>>) target(%97 : memref<1x128xf32, #tpu.memory_space<vmem>>) target_semaphore(%99 : memref<!tpu.dma_semaphore, #tpu.memory_space<semaphore_mem>>)
        %c0_i32_71 = arith.constant 0 : i32
        %c0_i32_72 = arith.constant 0 : i32
        %c1_i32_73 = arith.constant 1 : i32
        %c0_i32_74 = arith.constant 0 : i32
        %100 = tpu.memref_slice %arg5[%94, %c0_i32_74] : memref<24x128xf32, #tpu.memory_space<any>> -> memref<1x128xf32, #tpu.memory_space<any>>
        %c0_i32_75 = arith.constant 0 : i32
        %101 = tpu.memref_slice %arg8[%c0_i32_71, %88, %c0_i32_75] : memref<2x128x128xf32, #tpu.memory_space<vmem>> -> memref<1x1x128xf32, #tpu.memory_space<vmem>>
        %102 = tpu.memref_squeeze %101 : memref<1x1x128xf32, #tpu.memory_space<vmem>> -> memref<1x128xf32, #tpu.memory_space<vmem>>
        %103 = tpu.memref_slice %arg9[%c0_i32_72, %c1_i32_73] : memref<2x2x!tpu.dma_semaphore, #tpu.memory_space<semaphore_mem>> -> memref<1x1x!tpu.dma_semaphore, #tpu.memory_space<semaphore_mem>>
        %104 = tpu.memref_squeeze %103 : memref<1x1x!tpu.dma_semaphore, #tpu.memory_space<semaphore_mem>> -> memref<!tpu.dma_semaphore, #tpu.memory_space<semaphore_mem>>
        tpu.enqueue_dma source(%100 : memref<1x128xf32, #tpu.memory_space<any>>) target(%102 : memref<1x128xf32, #tpu.memory_space<vmem>>) target_semaphore(%104 : memref<!tpu.dma_semaphore, #tpu.memory_space<semaphore_mem>>)
        %c4_i32 = arith.constant 4 : i32
        %105 = arith.addi %36, %c4_i32 : i32
        %c0_i32_76 = arith.constant 0 : i32
        %106 = arith.addi %c0_i32_76, %105 : i32
        %107 = arith.index_cast %106 : i32 to index
        %108 = memref.load %arg1[%107] : memref<128xi32, #tpu.memory_space<smem>>
        %c0_i32_77 = arith.constant 0 : i32
        %109 = arith.addi %c0_i32_77, %105 : i32
        %110 = arith.index_cast %109 : i32 to index
        %111 = memref.load %arg2[%110] : memref<128xi32, #tpu.memory_space<smem>>
        %c0_i32_78 = arith.constant 0 : i32
        %c0_i32_79 = arith.constant 0 : i32
        %c0_i32_80 = arith.constant 0 : i32
        %c0_i32_81 = arith.constant 0 : i32
        %112 = tpu.memref_slice %arg4[%108, %c0_i32_81] : memref<16x128xf32, #tpu.memory_space<any>> -> memref<1x128xf32, #tpu.memory_space<any>>
        %c0_i32_82 = arith.constant 0 : i32
        %113 = tpu.memref_slice %arg7[%c0_i32_78, %105, %c0_i32_82] : memref<2x128x128xf32, #tpu.memory_space<vmem>> -> memref<1x1x128xf32, #tpu.memory_space<vmem>>
        %114 = tpu.memref_squeeze %113 : memref<1x1x128xf32, #tpu.memory_space<vmem>> -> memref<1x128xf32, #tpu.memory_space<vmem>>
        %115 = tpu.memref_slice %arg9[%c0_i32_79, %c0_i32_80] : memref<2x2x!tpu.dma_semaphore, #tpu.memory_space<semaphore_mem>> -> memref<1x1x!tpu.dma_semaphore, #tpu.memory_space<semaphore_mem>>
        %116 = tpu.memref_squeeze %115 : memref<1x1x!tpu.dma_semaphore, #tpu.memory_space<semaphore_mem>> -> memref<!tpu.dma_semaphore, #tpu.memory_space<semaphore_mem>>
        tpu.enqueue_dma source(%112 : memref<1x128xf32, #tpu.memory_space<any>>) target(%114 : memref<1x128xf32, #tpu.memory_space<vmem>>) target_semaphore(%116 : memref<!tpu.dma_semaphore, #tpu.memory_space<semaphore_mem>>)
        %c0_i32_83 = arith.constant 0 : i32
        %c0_i32_84 = arith.constant 0 : i32
        %c1_i32_85 = arith.constant 1 : i32
        %c0_i32_86 = arith.constant 0 : i32
        %117 = tpu.memref_slice %arg5[%111, %c0_i32_86] : memref<24x128xf32, #tpu.memory_space<any>> -> memref<1x128xf32, #tpu.memory_space<any>>
        %c0_i32_87 = arith.constant 0 : i32
        %118 = tpu.memref_slice %arg8[%c0_i32_83, %105, %c0_i32_87] : memref<2x128x128xf32, #tpu.memory_space<vmem>> -> memref<1x1x128xf32, #tpu.memory_space<vmem>>
        %119 = tpu.memref_squeeze %118 : memref<1x1x128xf32, #tpu.memory_space<vmem>> -> memref<1x128xf32, #tpu.memory_space<vmem>>
        %120 = tpu.memref_slice %arg9[%c0_i32_84, %c1_i32_85] : memref<2x2x!tpu.dma_semaphore, #tpu.memory_space<semaphore_mem>> -> memref<1x1x!tpu.dma_semaphore, #tpu.memory_space<semaphore_mem>>
        %121 = tpu.memref_squeeze %120 : memref<1x1x!tpu.dma_semaphore, #tpu.memory_space<semaphore_mem>> -> memref<!tpu.dma_semaphore, #tpu.memory_space<semaphore_mem>>
        tpu.enqueue_dma source(%117 : memref<1x128xf32, #tpu.memory_space<any>>) target(%119 : memref<1x128xf32, #tpu.memory_space<vmem>>) target_semaphore(%121 : memref<!tpu.dma_semaphore, #tpu.memory_space<semaphore_mem>>)
        %c5_i32 = arith.constant 5 : i32
        %122 = arith.addi %36, %c5_i32 : i32
        %c0_i32_88 = arith.constant 0 : i32
        %123 = arith.addi %c0_i32_88, %122 : i32
        %124 = arith.index_cast %123 : i32 to index
        %125 = memref.load %arg1[%124] : memref<128xi32, #tpu.memory_space<smem>>
        %c0_i32_89 = arith.constant 0 : i32
        %126 = arith.addi %c0_i32_89, %122 : i32
        %127 = arith.index_cast %126 : i32 to index
        %128 = memref.load %arg2[%127] : memref<128xi32, #tpu.memory_space<smem>>
        %c0_i32_90 = arith.constant 0 : i32
        %c0_i32_91 = arith.constant 0 : i32
        %c0_i32_92 = arith.constant 0 : i32
        %c0_i32_93 = arith.constant 0 : i32
        %129 = tpu.memref_slice %arg4[%125, %c0_i32_93] : memref<16x128xf32, #tpu.memory_space<any>> -> memref<1x128xf32, #tpu.memory_space<any>>
        %c0_i32_94 = arith.constant 0 : i32
        %130 = tpu.memref_slice %arg7[%c0_i32_90, %122, %c0_i32_94] : memref<2x128x128xf32, #tpu.memory_space<vmem>> -> memref<1x1x128xf32, #tpu.memory_space<vmem>>
        %131 = tpu.memref_squeeze %130 : memref<1x1x128xf32, #tpu.memory_space<vmem>> -> memref<1x128xf32, #tpu.memory_space<vmem>>
        %132 = tpu.memref_slice %arg9[%c0_i32_91, %c0_i32_92] : memref<2x2x!tpu.dma_semaphore, #tpu.memory_space<semaphore_mem>> -> memref<1x1x!tpu.dma_semaphore, #tpu.memory_space<semaphore_mem>>
        %133 = tpu.memref_squeeze %132 : memref<1x1x!tpu.dma_semaphore, #tpu.memory_space<semaphore_mem>> -> memref<!tpu.dma_semaphore, #tpu.memory_space<semaphore_mem>>
        tpu.enqueue_dma source(%129 : memref<1x128xf32, #tpu.memory_space<any>>) target(%131 : memref<1x128xf32, #tpu.memory_space<vmem>>) target_semaphore(%133 : memref<!tpu.dma_semaphore, #tpu.memory_space<semaphore_mem>>)
        %c0_i32_95 = arith.constant 0 : i32
        %c0_i32_96 = arith.constant 0 : i32
        %c1_i32_97 = arith.constant 1 : i32
        %c0_i32_98 = arith.constant 0 : i32
        %134 = tpu.memref_slice %arg5[%128, %c0_i32_98] : memref<24x128xf32, #tpu.memory_space<any>> -> memref<1x128xf32, #tpu.memory_space<any>>
        %c0_i32_99 = arith.constant 0 : i32
        %135 = tpu.memref_slice %arg8[%c0_i32_95, %122, %c0_i32_99] : memref<2x128x128xf32, #tpu.memory_space<vmem>> -> memref<1x1x128xf32, #tpu.memory_space<vmem>>
        %136 = tpu.memref_squeeze %135 : memref<1x1x128xf32, #tpu.memory_space<vmem>> -> memref<1x128xf32, #tpu.memory_space<vmem>>
        %137 = tpu.memref_slice %arg9[%c0_i32_96, %c1_i32_97] : memref<2x2x!tpu.dma_semaphore, #tpu.memory_space<semaphore_mem>> -> memref<1x1x!tpu.dma_semaphore, #tpu.memory_space<semaphore_mem>>
        %138 = tpu.memref_squeeze %137 : memref<1x1x!tpu.dma_semaphore, #tpu.memory_space<semaphore_mem>> -> memref<!tpu.dma_semaphore, #tpu.memory_space<semaphore_mem>>
        tpu.enqueue_dma source(%134 : memref<1x128xf32, #tpu.memory_space<any>>) target(%136 : memref<1x128xf32, #tpu.memory_space<vmem>>) target_semaphore(%138 : memref<!tpu.dma_semaphore, #tpu.memory_space<semaphore_mem>>)
        %c6_i32 = arith.constant 6 : i32
        %139 = arith.addi %36, %c6_i32 : i32
        %c0_i32_100 = arith.constant 0 : i32
        %140 = arith.addi %c0_i32_100, %139 : i32
        %141 = arith.index_cast %140 : i32 to index
        %142 = memref.load %arg1[%141] : memref<128xi32, #tpu.memory_space<smem>>
        %c0_i32_101 = arith.constant 0 : i32
        %143 = arith.addi %c0_i32_101, %139 : i32
        %144 = arith.index_cast %143 : i32 to index
        %145 = memref.load %arg2[%144] : memref<128xi32, #tpu.memory_space<smem>>
        %c0_i32_102 = arith.constant 0 : i32
        %c0_i32_103 = arith.constant 0 : i32
        %c0_i32_104 = arith.constant 0 : i32
        %c0_i32_105 = arith.constant 0 : i32
        %146 = tpu.memref_slice %arg4[%142, %c0_i32_105] : memref<16x128xf32, #tpu.memory_space<any>> -> memref<1x128xf32, #tpu.memory_space<any>>
        %c0_i32_106 = arith.constant 0 : i32
        %147 = tpu.memref_slice %arg7[%c0_i32_102, %139, %c0_i32_106] : memref<2x128x128xf32, #tpu.memory_space<vmem>> -> memref<1x1x128xf32, #tpu.memory_space<vmem>>
        %148 = tpu.memref_squeeze %147 : memref<1x1x128xf32, #tpu.memory_space<vmem>> -> memref<1x128xf32, #tpu.memory_space<vmem>>
        %149 = tpu.memref_slice %arg9[%c0_i32_103, %c0_i32_104] : memref<2x2x!tpu.dma_semaphore, #tpu.memory_space<semaphore_mem>> -> memref<1x1x!tpu.dma_semaphore, #tpu.memory_space<semaphore_mem>>
        %150 = tpu.memref_squeeze %149 : memref<1x1x!tpu.dma_semaphore, #tpu.memory_space<semaphore_mem>> -> memref<!tpu.dma_semaphore, #tpu.memory_space<semaphore_mem>>
        tpu.enqueue_dma source(%146 : memref<1x128xf32, #tpu.memory_space<any>>) target(%148 : memref<1x128xf32, #tpu.memory_space<vmem>>) target_semaphore(%150 : memref<!tpu.dma_semaphore, #tpu.memory_space<semaphore_mem>>)
        %c0_i32_107 = arith.constant 0 : i32
        %c0_i32_108 = arith.constant 0 : i32
        %c1_i32_109 = arith.constant 1 : i32
        %c0_i32_110 = arith.constant 0 : i32
        %151 = tpu.memref_slice %arg5[%145, %c0_i32_110] : memref<24x128xf32, #tpu.memory_space<any>> -> memref<1x128xf32, #tpu.memory_space<any>>
        %c0_i32_111 = arith.constant 0 : i32
        %152 = tpu.memref_slice %arg8[%c0_i32_107, %139, %c0_i32_111] : memref<2x128x128xf32, #tpu.memory_space<vmem>> -> memref<1x1x128xf32, #tpu.memory_space<vmem>>
        %153 = tpu.memref_squeeze %152 : memref<1x1x128xf32, #tpu.memory_space<vmem>> -> memref<1x128xf32, #tpu.memory_space<vmem>>
        %154 = tpu.memref_slice %arg9[%c0_i32_108, %c1_i32_109] : memref<2x2x!tpu.dma_semaphore, #tpu.memory_space<semaphore_mem>> -> memref<1x1x!tpu.dma_semaphore, #tpu.memory_space<semaphore_mem>>
        %155 = tpu.memref_squeeze %154 : memref<1x1x!tpu.dma_semaphore, #tpu.memory_space<semaphore_mem>> -> memref<!tpu.dma_semaphore, #tpu.memory_space<semaphore_mem>>
        tpu.enqueue_dma source(%151 : memref<1x128xf32, #tpu.memory_space<any>>) target(%153 : memref<1x128xf32, #tpu.memory_space<vmem>>) target_semaphore(%155 : memref<!tpu.dma_semaphore, #tpu.memory_space<semaphore_mem>>)
        %c7_i32 = arith.constant 7 : i32
        %156 = arith.addi %36, %c7_i32 : i32
        %c0_i32_112 = arith.constant 0 : i32
        %157 = arith.addi %c0_i32_112, %156 : i32
        %158 = arith.index_cast %157 : i32 to index
        %159 = memref.load %arg1[%158] : memref<128xi32, #tpu.memory_space<smem>>
        %c0_i32_113 = arith.constant 0 : i32
        %160 = arith.addi %c0_i32_113, %156 : i32
        %161 = arith.index_cast %160 : i32 to index
        %162 = memref.load %arg2[%161] : memref<128xi32, #tpu.memory_space<smem>>
        %c0_i32_114 = arith.constant 0 : i32
        %c0_i32_115 = arith.constant 0 : i32
        %c0_i32_116 = arith.constant 0 : i32
        %c0_i32_117 = arith.constant 0 : i32
        %163 = tpu.memref_slice %arg4[%159, %c0_i32_117] : memref<16x128xf32, #tpu.memory_space<any>> -> memref<1x128xf32, #tpu.memory_space<any>>
        %c0_i32_118 = arith.constant 0 : i32
        %164 = tpu.memref_slice %arg7[%c0_i32_114, %156, %c0_i32_118] : memref<2x128x128xf32, #tpu.memory_space<vmem>> -> memref<1x1x128xf32, #tpu.memory_space<vmem>>
        %165 = tpu.memref_squeeze %164 : memref<1x1x128xf32, #tpu.memory_space<vmem>> -> memref<1x128xf32, #tpu.memory_space<vmem>>
        %166 = tpu.memref_slice %arg9[%c0_i32_115, %c0_i32_116] : memref<2x2x!tpu.dma_semaphore, #tpu.memory_space<semaphore_mem>> -> memref<1x1x!tpu.dma_semaphore, #tpu.memory_space<semaphore_mem>>
        %167 = tpu.memref_squeeze %166 : memref<1x1x!tpu.dma_semaphore, #tpu.memory_space<semaphore_mem>> -> memref<!tpu.dma_semaphore, #tpu.memory_space<semaphore_mem>>
        tpu.enqueue_dma source(%163 : memref<1x128xf32, #tpu.memory_space<any>>) target(%165 : memref<1x128xf32, #tpu.memory_space<vmem>>) target_semaphore(%167 : memref<!tpu.dma_semaphore, #tpu.memory_space<semaphore_mem>>)
        %c0_i32_119 = arith.constant 0 : i32
        %c0_i32_120 = arith.constant 0 : i32
        %c1_i32_121 = arith.constant 1 : i32
        %c0_i32_122 = arith.constant 0 : i32
        %168 = tpu.memref_slice %arg5[%162, %c0_i32_122] : memref<24x128xf32, #tpu.memory_space<any>> -> memref<1x128xf32, #tpu.memory_space<any>>
        %c0_i32_123 = arith.constant 0 : i32
        %169 = tpu.memref_slice %arg8[%c0_i32_119, %156, %c0_i32_123] : memref<2x128x128xf32, #tpu.memory_space<vmem>> -> memref<1x1x128xf32, #tpu.memory_space<vmem>>
        %170 = tpu.memref_squeeze %169 : memref<1x1x128xf32, #tpu.memory_space<vmem>> -> memref<1x128xf32, #tpu.memory_space<vmem>>
        %171 = tpu.memref_slice %arg9[%c0_i32_120, %c1_i32_121] : memref<2x2x!tpu.dma_semaphore, #tpu.memory_space<semaphore_mem>> -> memref<1x1x!tpu.dma_semaphore, #tpu.memory_space<semaphore_mem>>
        %172 = tpu.memref_squeeze %171 : memref<1x1x!tpu.dma_semaphore, #tpu.memory_space<semaphore_mem>> -> memref<!tpu.dma_semaphore, #tpu.memory_space<semaphore_mem>>
        tpu.enqueue_dma source(%168 : memref<1x128xf32, #tpu.memory_space<any>>) target(%170 : memref<1x128xf32, #tpu.memory_space<vmem>>) target_semaphore(%172 : memref<!tpu.dma_semaphore, #tpu.memory_space<semaphore_mem>>)
      }
      %c16_i32_23 = arith.constant 16 : i32
    } else {
    }
    %c1_i32_2 = arith.constant 1 : i32
    %5 = arith.addi %arg0, %c1_i32_2 : i32
    %c1_i32_3 = arith.constant 1 : i32
    %6 = arith.cmpi slt, %5, %c1_i32_3 : i32
    %7 = arith.extui %6 : i1 to i32
    %c0_i32_4 = arith.constant 0 : i32
    %8 = arith.cmpi ne, %7, %c0_i32_4 : i32
    scf.if %8 {
      %c1_i32_21 = arith.constant 1 : i32
      %33 = arith.addi %arg0, %c1_i32_21 : i32
      %c1_i32_22 = arith.constant 1 : i32
      %34 = arith.addi %arg0, %c1_i32_22 : i32
      %c1_i32_23 = arith.constant 1 : i32
      %35 = arith.andi %34, %c1_i32_23 : i32
      %c128_i32 = arith.constant 128 : i32
      %36 = arith.muli %33, %c128_i32 : i32
      %c0_i32_24 = arith.constant 0 : i32
      %c16_i32 = arith.constant 16 : i32
      %37 = arith.addi %c0_i32_24, %c16_i32 : i32
      %c1_i32_25 = arith.constant 1 : i32
      scf.for %arg10 = %c0_i32_24 to %37 step %c1_i32_25  : i32 {
        %c1_i32_27 = arith.constant 1 : i32
        %38 = arith.muli %arg10, %c1_i32_27 : i32
        %c0_i32_28 = arith.constant 0 : i32
        %39 = arith.addi %c0_i32_28, %38 : i32
        %c8_i32 = arith.constant 8 : i32
        %40 = arith.muli %39, %c8_i32 : i32
        %c0_i32_29 = arith.constant 0 : i32
        %41 = arith.addi %40, %c0_i32_29 : i32
        %42 = arith.addi %36, %41 : i32
        %43 = arith.index_cast %42 : i32 to index
        %44 = memref.load %arg1[%43] : memref<128xi32, #tpu.memory_space<smem>>
        %45 = arith.addi %36, %41 : i32
        %46 = arith.index_cast %45 : i32 to index
        %47 = memref.load %arg2[%46] : memref<128xi32, #tpu.memory_space<smem>>
        %c0_i32_30 = arith.constant 0 : i32
        %c0_i32_31 = arith.constant 0 : i32
        %48 = tpu.memref_slice %arg4[%44, %c0_i32_31] : memref<16x128xf32, #tpu.memory_space<any>> -> memref<1x128xf32, #tpu.memory_space<any>>
        %c0_i32_32 = arith.constant 0 : i32
        %49 = tpu.memref_slice %arg7[%35, %41, %c0_i32_32] : memref<2x128x128xf32, #tpu.memory_space<vmem>> -> memref<1x1x128xf32, #tpu.memory_space<vmem>>
        %50 = tpu.memref_squeeze %49 : memref<1x1x128xf32, #tpu.memory_space<vmem>> -> memref<1x128xf32, #tpu.memory_space<vmem>>
        %51 = tpu.memref_slice %arg9[%35, %c0_i32_30] : memref<2x2x!tpu.dma_semaphore, #tpu.memory_space<semaphore_mem>> -> memref<1x1x!tpu.dma_semaphore, #tpu.memory_space<semaphore_mem>>
        %52 = tpu.memref_squeeze %51 : memref<1x1x!tpu.dma_semaphore, #tpu.memory_space<semaphore_mem>> -> memref<!tpu.dma_semaphore, #tpu.memory_space<semaphore_mem>>
        tpu.enqueue_dma source(%48 : memref<1x128xf32, #tpu.memory_space<any>>) target(%50 : memref<1x128xf32, #tpu.memory_space<vmem>>) target_semaphore(%52 : memref<!tpu.dma_semaphore, #tpu.memory_space<semaphore_mem>>)
        %c1_i32_33 = arith.constant 1 : i32
        %c0_i32_34 = arith.constant 0 : i32
        %53 = tpu.memref_slice %arg5[%47, %c0_i32_34] : memref<24x128xf32, #tpu.memory_space<any>> -> memref<1x128xf32, #tpu.memory_space<any>>
        %c0_i32_35 = arith.constant 0 : i32
        %54 = tpu.memref_slice %arg8[%35, %41, %c0_i32_35] : memref<2x128x128xf32, #tpu.memory_space<vmem>> -> memref<1x1x128xf32, #tpu.memory_space<vmem>>
        %55 = tpu.memref_squeeze %54 : memref<1x1x128xf32, #tpu.memory_space<vmem>> -> memref<1x128xf32, #tpu.memory_space<vmem>>
        %56 = tpu.memref_slice %arg9[%35, %c1_i32_33] : memref<2x2x!tpu.dma_semaphore, #tpu.memory_space<semaphore_mem>> -> memref<1x1x!tpu.dma_semaphore, #tpu.memory_space<semaphore_mem>>
        %57 = tpu.memref_squeeze %56 : memref<1x1x!tpu.dma_semaphore, #tpu.memory_space<semaphore_mem>> -> memref<!tpu.dma_semaphore, #tpu.memory_space<semaphore_mem>>
        tpu.enqueue_dma source(%53 : memref<1x128xf32, #tpu.memory_space<any>>) target(%55 : memref<1x128xf32, #tpu.memory_space<vmem>>) target_semaphore(%57 : memref<!tpu.dma_semaphore, #tpu.memory_space<semaphore_mem>>)
        %c1_i32_36 = arith.constant 1 : i32
        %58 = arith.addi %40, %c1_i32_36 : i32
        %59 = arith.addi %36, %58 : i32
        %60 = arith.index_cast %59 : i32 to index
        %61 = memref.load %arg1[%60] : memref<128xi32, #tpu.memory_space<smem>>
        %62 = arith.addi %36, %58 : i32
        %63 = arith.index_cast %62 : i32 to index
        %64 = memref.load %arg2[%63] : memref<128xi32, #tpu.memory_space<smem>>
        %c0_i32_37 = arith.constant 0 : i32
        %c0_i32_38 = arith.constant 0 : i32
        %65 = tpu.memref_slice %arg4[%61, %c0_i32_38] : memref<16x128xf32, #tpu.memory_space<any>> -> memref<1x128xf32, #tpu.memory_space<any>>
        %c0_i32_39 = arith.constant 0 : i32
        %66 = tpu.memref_slice %arg7[%35, %58, %c0_i32_39] : memref<2x128x128xf32, #tpu.memory_space<vmem>> -> memref<1x1x128xf32, #tpu.memory_space<vmem>>
        %67 = tpu.memref_squeeze %66 : memref<1x1x128xf32, #tpu.memory_space<vmem>> -> memref<1x128xf32, #tpu.memory_space<vmem>>
        %68 = tpu.memref_slice %arg9[%35, %c0_i32_37] : memref<2x2x!tpu.dma_semaphore, #tpu.memory_space<semaphore_mem>> -> memref<1x1x!tpu.dma_semaphore, #tpu.memory_space<semaphore_mem>>
        %69 = tpu.memref_squeeze %68 : memref<1x1x!tpu.dma_semaphore, #tpu.memory_space<semaphore_mem>> -> memref<!tpu.dma_semaphore, #tpu.memory_space<semaphore_mem>>
        tpu.enqueue_dma source(%65 : memref<1x128xf32, #tpu.memory_space<any>>) target(%67 : memref<1x128xf32, #tpu.memory_space<vmem>>) target_semaphore(%69 : memref<!tpu.dma_semaphore, #tpu.memory_space<semaphore_mem>>)
        %c1_i32_40 = arith.constant 1 : i32
        %c0_i32_41 = arith.constant 0 : i32
        %70 = tpu.memref_slice %arg5[%64, %c0_i32_41] : memref<24x128xf32, #tpu.memory_space<any>> -> memref<1x128xf32, #tpu.memory_space<any>>
        %c0_i32_42 = arith.constant 0 : i32
        %71 = tpu.memref_slice %arg8[%35, %58, %c0_i32_42] : memref<2x128x128xf32, #tpu.memory_space<vmem>> -> memref<1x1x128xf32, #tpu.memory_space<vmem>>
        %72 = tpu.memref_squeeze %71 : memref<1x1x128xf32, #tpu.memory_space<vmem>> -> memref<1x128xf32, #tpu.memory_space<vmem>>
        %73 = tpu.memref_slice %arg9[%35, %c1_i32_40] : memref<2x2x!tpu.dma_semaphore, #tpu.memory_space<semaphore_mem>> -> memref<1x1x!tpu.dma_semaphore, #tpu.memory_space<semaphore_mem>>
        %74 = tpu.memref_squeeze %73 : memref<1x1x!tpu.dma_semaphore, #tpu.memory_space<semaphore_mem>> -> memref<!tpu.dma_semaphore, #tpu.memory_space<semaphore_mem>>
        tpu.enqueue_dma source(%70 : memref<1x128xf32, #tpu.memory_space<any>>) target(%72 : memref<1x128xf32, #tpu.memory_space<vmem>>) target_semaphore(%74 : memref<!tpu.dma_semaphore, #tpu.memory_space<semaphore_mem>>)
        %c2_i32 = arith.constant 2 : i32
        %75 = arith.addi %40, %c2_i32 : i32
        %76 = arith.addi %36, %75 : i32
        %77 = arith.index_cast %76 : i32 to index
        %78 = memref.load %arg1[%77] : memref<128xi32, #tpu.memory_space<smem>>
        %79 = arith.addi %36, %75 : i32
        %80 = arith.index_cast %79 : i32 to index
        %81 = memref.load %arg2[%80] : memref<128xi32, #tpu.memory_space<smem>>
        %c0_i32_43 = arith.constant 0 : i32
        %c0_i32_44 = arith.constant 0 : i32
        %82 = tpu.memref_slice %arg4[%78, %c0_i32_44] : memref<16x128xf32, #tpu.memory_space<any>> -> memref<1x128xf32, #tpu.memory_space<any>>
        %c0_i32_45 = arith.constant 0 : i32
        %83 = tpu.memref_slice %arg7[%35, %75, %c0_i32_45] : memref<2x128x128xf32, #tpu.memory_space<vmem>> -> memref<1x1x128xf32, #tpu.memory_space<vmem>>
        %84 = tpu.memref_squeeze %83 : memref<1x1x128xf32, #tpu.memory_space<vmem>> -> memref<1x128xf32, #tpu.memory_space<vmem>>
        %85 = tpu.memref_slice %arg9[%35, %c0_i32_43] : memref<2x2x!tpu.dma_semaphore, #tpu.memory_space<semaphore_mem>> -> memref<1x1x!tpu.dma_semaphore, #tpu.memory_space<semaphore_mem>>
        %86 = tpu.memref_squeeze %85 : memref<1x1x!tpu.dma_semaphore, #tpu.memory_space<semaphore_mem>> -> memref<!tpu.dma_semaphore, #tpu.memory_space<semaphore_mem>>
        tpu.enqueue_dma source(%82 : memref<1x128xf32, #tpu.memory_space<any>>) target(%84 : memref<1x128xf32, #tpu.memory_space<vmem>>) target_semaphore(%86 : memref<!tpu.dma_semaphore, #tpu.memory_space<semaphore_mem>>)
        %c1_i32_46 = arith.constant 1 : i32
        %c0_i32_47 = arith.constant 0 : i32
        %87 = tpu.memref_slice %arg5[%81, %c0_i32_47] : memref<24x128xf32, #tpu.memory_space<any>> -> memref<1x128xf32, #tpu.memory_space<any>>
        %c0_i32_48 = arith.constant 0 : i32
        %88 = tpu.memref_slice %arg8[%35, %75, %c0_i32_48] : memref<2x128x128xf32, #tpu.memory_space<vmem>> -> memref<1x1x128xf32, #tpu.memory_space<vmem>>
        %89 = tpu.memref_squeeze %88 : memref<1x1x128xf32, #tpu.memory_space<vmem>> -> memref<1x128xf32, #tpu.memory_space<vmem>>
        %90 = tpu.memref_slice %arg9[%35, %c1_i32_46] : memref<2x2x!tpu.dma_semaphore, #tpu.memory_space<semaphore_mem>> -> memref<1x1x!tpu.dma_semaphore, #tpu.memory_space<semaphore_mem>>
        %91 = tpu.memref_squeeze %90 : memref<1x1x!tpu.dma_semaphore, #tpu.memory_space<semaphore_mem>> -> memref<!tpu.dma_semaphore, #tpu.memory_space<semaphore_mem>>
        tpu.enqueue_dma source(%87 : memref<1x128xf32, #tpu.memory_space<any>>) target(%89 : memref<1x128xf32, #tpu.memory_space<vmem>>) target_semaphore(%91 : memref<!tpu.dma_semaphore, #tpu.memory_space<semaphore_mem>>)
        %c3_i32 = arith.constant 3 : i32
        %92 = arith.addi %40, %c3_i32 : i32
        %93 = arith.addi %36, %92 : i32
        %94 = arith.index_cast %93 : i32 to index
        %95 = memref.load %arg1[%94] : memref<128xi32, #tpu.memory_space<smem>>
        %96 = arith.addi %36, %92 : i32
        %97 = arith.index_cast %96 : i32 to index
        %98 = memref.load %arg2[%97] : memref<128xi32, #tpu.memory_space<smem>>
        %c0_i32_49 = arith.constant 0 : i32
        %c0_i32_50 = arith.constant 0 : i32
        %99 = tpu.memref_slice %arg4[%95, %c0_i32_50] : memref<16x128xf32, #tpu.memory_space<any>> -> memref<1x128xf32, #tpu.memory_space<any>>
        %c0_i32_51 = arith.constant 0 : i32
        %100 = tpu.memref_slice %arg7[%35, %92, %c0_i32_51] : memref<2x128x128xf32, #tpu.memory_space<vmem>> -> memref<1x1x128xf32, #tpu.memory_space<vmem>>
        %101 = tpu.memref_squeeze %100 : memref<1x1x128xf32, #tpu.memory_space<vmem>> -> memref<1x128xf32, #tpu.memory_space<vmem>>
        %102 = tpu.memref_slice %arg9[%35, %c0_i32_49] : memref<2x2x!tpu.dma_semaphore, #tpu.memory_space<semaphore_mem>> -> memref<1x1x!tpu.dma_semaphore, #tpu.memory_space<semaphore_mem>>
        %103 = tpu.memref_squeeze %102 : memref<1x1x!tpu.dma_semaphore, #tpu.memory_space<semaphore_mem>> -> memref<!tpu.dma_semaphore, #tpu.memory_space<semaphore_mem>>
        tpu.enqueue_dma source(%99 : memref<1x128xf32, #tpu.memory_space<any>>) target(%101 : memref<1x128xf32, #tpu.memory_space<vmem>>) target_semaphore(%103 : memref<!tpu.dma_semaphore, #tpu.memory_space<semaphore_mem>>)
        %c1_i32_52 = arith.constant 1 : i32
        %c0_i32_53 = arith.constant 0 : i32
        %104 = tpu.memref_slice %arg5[%98, %c0_i32_53] : memref<24x128xf32, #tpu.memory_space<any>> -> memref<1x128xf32, #tpu.memory_space<any>>
        %c0_i32_54 = arith.constant 0 : i32
        %105 = tpu.memref_slice %arg8[%35, %92, %c0_i32_54] : memref<2x128x128xf32, #tpu.memory_space<vmem>> -> memref<1x1x128xf32, #tpu.memory_space<vmem>>
        %106 = tpu.memref_squeeze %105 : memref<1x1x128xf32, #tpu.memory_space<vmem>> -> memref<1x128xf32, #tpu.memory_space<vmem>>
        %107 = tpu.memref_slice %arg9[%35, %c1_i32_52] : memref<2x2x!tpu.dma_semaphore, #tpu.memory_space<semaphore_mem>> -> memref<1x1x!tpu.dma_semaphore, #tpu.memory_space<semaphore_mem>>
        %108 = tpu.memref_squeeze %107 : memref<1x1x!tpu.dma_semaphore, #tpu.memory_space<semaphore_mem>> -> memref<!tpu.dma_semaphore, #tpu.memory_space<semaphore_mem>>
        tpu.enqueue_dma source(%104 : memref<1x128xf32, #tpu.memory_space<any>>) target(%106 : memref<1x128xf32, #tpu.memory_space<vmem>>) target_semaphore(%108 : memref<!tpu.dma_semaphore, #tpu.memory_space<semaphore_mem>>)
        %c4_i32 = arith.constant 4 : i32
        %109 = arith.addi %40, %c4_i32 : i32
        %110 = arith.addi %36, %109 : i32
        %111 = arith.index_cast %110 : i32 to index
        %112 = memref.load %arg1[%111] : memref<128xi32, #tpu.memory_space<smem>>
        %113 = arith.addi %36, %109 : i32
        %114 = arith.index_cast %113 : i32 to index
        %115 = memref.load %arg2[%114] : memref<128xi32, #tpu.memory_space<smem>>
        %c0_i32_55 = arith.constant 0 : i32
        %c0_i32_56 = arith.constant 0 : i32
        %116 = tpu.memref_slice %arg4[%112, %c0_i32_56] : memref<16x128xf32, #tpu.memory_space<any>> -> memref<1x128xf32, #tpu.memory_space<any>>
        %c0_i32_57 = arith.constant 0 : i32
        %117 = tpu.memref_slice %arg7[%35, %109, %c0_i32_57] : memref<2x128x128xf32, #tpu.memory_space<vmem>> -> memref<1x1x128xf32, #tpu.memory_space<vmem>>
        %118 = tpu.memref_squeeze %117 : memref<1x1x128xf32, #tpu.memory_space<vmem>> -> memref<1x128xf32, #tpu.memory_space<vmem>>
        %119 = tpu.memref_slice %arg9[%35, %c0_i32_55] : memref<2x2x!tpu.dma_semaphore, #tpu.memory_space<semaphore_mem>> -> memref<1x1x!tpu.dma_semaphore, #tpu.memory_space<semaphore_mem>>
        %120 = tpu.memref_squeeze %119 : memref<1x1x!tpu.dma_semaphore, #tpu.memory_space<semaphore_mem>> -> memref<!tpu.dma_semaphore, #tpu.memory_space<semaphore_mem>>
        tpu.enqueue_dma source(%116 : memref<1x128xf32, #tpu.memory_space<any>>) target(%118 : memref<1x128xf32, #tpu.memory_space<vmem>>) target_semaphore(%120 : memref<!tpu.dma_semaphore, #tpu.memory_space<semaphore_mem>>)
        %c1_i32_58 = arith.constant 1 : i32
        %c0_i32_59 = arith.constant 0 : i32
        %121 = tpu.memref_slice %arg5[%115, %c0_i32_59] : memref<24x128xf32, #tpu.memory_space<any>> -> memref<1x128xf32, #tpu.memory_space<any>>
        %c0_i32_60 = arith.constant 0 : i32
        %122 = tpu.memref_slice %arg8[%35, %109, %c0_i32_60] : memref<2x128x128xf32, #tpu.memory_space<vmem>> -> memref<1x1x128xf32, #tpu.memory_space<vmem>>
        %123 = tpu.memref_squeeze %122 : memref<1x1x128xf32, #tpu.memory_space<vmem>> -> memref<1x128xf32, #tpu.memory_space<vmem>>
        %124 = tpu.memref_slice %arg9[%35, %c1_i32_58] : memref<2x2x!tpu.dma_semaphore, #tpu.memory_space<semaphore_mem>> -> memref<1x1x!tpu.dma_semaphore, #tpu.memory_space<semaphore_mem>>
        %125 = tpu.memref_squeeze %124 : memref<1x1x!tpu.dma_semaphore, #tpu.memory_space<semaphore_mem>> -> memref<!tpu.dma_semaphore, #tpu.memory_space<semaphore_mem>>
        tpu.enqueue_dma source(%121 : memref<1x128xf32, #tpu.memory_space<any>>) target(%123 : memref<1x128xf32, #tpu.memory_space<vmem>>) target_semaphore(%125 : memref<!tpu.dma_semaphore, #tpu.memory_space<semaphore_mem>>)
        %c5_i32 = arith.constant 5 : i32
        %126 = arith.addi %40, %c5_i32 : i32
        %127 = arith.addi %36, %126 : i32
        %128 = arith.index_cast %127 : i32 to index
        %129 = memref.load %arg1[%128] : memref<128xi32, #tpu.memory_space<smem>>
        %130 = arith.addi %36, %126 : i32
        %131 = arith.index_cast %130 : i32 to index
        %132 = memref.load %arg2[%131] : memref<128xi32, #tpu.memory_space<smem>>
        %c0_i32_61 = arith.constant 0 : i32
        %c0_i32_62 = arith.constant 0 : i32
        %133 = tpu.memref_slice %arg4[%129, %c0_i32_62] : memref<16x128xf32, #tpu.memory_space<any>> -> memref<1x128xf32, #tpu.memory_space<any>>
        %c0_i32_63 = arith.constant 0 : i32
        %134 = tpu.memref_slice %arg7[%35, %126, %c0_i32_63] : memref<2x128x128xf32, #tpu.memory_space<vmem>> -> memref<1x1x128xf32, #tpu.memory_space<vmem>>
        %135 = tpu.memref_squeeze %134 : memref<1x1x128xf32, #tpu.memory_space<vmem>> -> memref<1x128xf32, #tpu.memory_space<vmem>>
        %136 = tpu.memref_slice %arg9[%35, %c0_i32_61] : memref<2x2x!tpu.dma_semaphore, #tpu.memory_space<semaphore_mem>> -> memref<1x1x!tpu.dma_semaphore, #tpu.memory_space<semaphore_mem>>
        %137 = tpu.memref_squeeze %136 : memref<1x1x!tpu.dma_semaphore, #tpu.memory_space<semaphore_mem>> -> memref<!tpu.dma_semaphore, #tpu.memory_space<semaphore_mem>>
        tpu.enqueue_dma source(%133 : memref<1x128xf32, #tpu.memory_space<any>>) target(%135 : memref<1x128xf32, #tpu.memory_space<vmem>>) target_semaphore(%137 : memref<!tpu.dma_semaphore, #tpu.memory_space<semaphore_mem>>)
        %c1_i32_64 = arith.constant 1 : i32
        %c0_i32_65 = arith.constant 0 : i32
        %138 = tpu.memref_slice %arg5[%132, %c0_i32_65] : memref<24x128xf32, #tpu.memory_space<any>> -> memref<1x128xf32, #tpu.memory_space<any>>
        %c0_i32_66 = arith.constant 0 : i32
        %139 = tpu.memref_slice %arg8[%35, %126, %c0_i32_66] : memref<2x128x128xf32, #tpu.memory_space<vmem>> -> memref<1x1x128xf32, #tpu.memory_space<vmem>>
        %140 = tpu.memref_squeeze %139 : memref<1x1x128xf32, #tpu.memory_space<vmem>> -> memref<1x128xf32, #tpu.memory_space<vmem>>
        %141 = tpu.memref_slice %arg9[%35, %c1_i32_64] : memref<2x2x!tpu.dma_semaphore, #tpu.memory_space<semaphore_mem>> -> memref<1x1x!tpu.dma_semaphore, #tpu.memory_space<semaphore_mem>>
        %142 = tpu.memref_squeeze %141 : memref<1x1x!tpu.dma_semaphore, #tpu.memory_space<semaphore_mem>> -> memref<!tpu.dma_semaphore, #tpu.memory_space<semaphore_mem>>
        tpu.enqueue_dma source(%138 : memref<1x128xf32, #tpu.memory_space<any>>) target(%140 : memref<1x128xf32, #tpu.memory_space<vmem>>) target_semaphore(%142 : memref<!tpu.dma_semaphore, #tpu.memory_space<semaphore_mem>>)
        %c6_i32 = arith.constant 6 : i32
        %143 = arith.addi %40, %c6_i32 : i32
        %144 = arith.addi %36, %143 : i32
        %145 = arith.index_cast %144 : i32 to index
        %146 = memref.load %arg1[%145] : memref<128xi32, #tpu.memory_space<smem>>
        %147 = arith.addi %36, %143 : i32
        %148 = arith.index_cast %147 : i32 to index
        %149 = memref.load %arg2[%148] : memref<128xi32, #tpu.memory_space<smem>>
        %c0_i32_67 = arith.constant 0 : i32
        %c0_i32_68 = arith.constant 0 : i32
        %150 = tpu.memref_slice %arg4[%146, %c0_i32_68] : memref<16x128xf32, #tpu.memory_space<any>> -> memref<1x128xf32, #tpu.memory_space<any>>
        %c0_i32_69 = arith.constant 0 : i32
        %151 = tpu.memref_slice %arg7[%35, %143, %c0_i32_69] : memref<2x128x128xf32, #tpu.memory_space<vmem>> -> memref<1x1x128xf32, #tpu.memory_space<vmem>>
        %152 = tpu.memref_squeeze %151 : memref<1x1x128xf32, #tpu.memory_space<vmem>> -> memref<1x128xf32, #tpu.memory_space<vmem>>
        %153 = tpu.memref_slice %arg9[%35, %c0_i32_67] : memref<2x2x!tpu.dma_semaphore, #tpu.memory_space<semaphore_mem>> -> memref<1x1x!tpu.dma_semaphore, #tpu.memory_space<semaphore_mem>>
        %154 = tpu.memref_squeeze %153 : memref<1x1x!tpu.dma_semaphore, #tpu.memory_space<semaphore_mem>> -> memref<!tpu.dma_semaphore, #tpu.memory_space<semaphore_mem>>
        tpu.enqueue_dma source(%150 : memref<1x128xf32, #tpu.memory_space<any>>) target(%152 : memref<1x128xf32, #tpu.memory_space<vmem>>) target_semaphore(%154 : memref<!tpu.dma_semaphore, #tpu.memory_space<semaphore_mem>>)
        %c1_i32_70 = arith.constant 1 : i32
        %c0_i32_71 = arith.constant 0 : i32
        %155 = tpu.memref_slice %arg5[%149, %c0_i32_71] : memref<24x128xf32, #tpu.memory_space<any>> -> memref<1x128xf32, #tpu.memory_space<any>>
        %c0_i32_72 = arith.constant 0 : i32
        %156 = tpu.memref_slice %arg8[%35, %143, %c0_i32_72] : memref<2x128x128xf32, #tpu.memory_space<vmem>> -> memref<1x1x128xf32, #tpu.memory_space<vmem>>
        %157 = tpu.memref_squeeze %156 : memref<1x1x128xf32, #tpu.memory_space<vmem>> -> memref<1x128xf32, #tpu.memory_space<vmem>>
        %158 = tpu.memref_slice %arg9[%35, %c1_i32_70] : memref<2x2x!tpu.dma_semaphore, #tpu.memory_space<semaphore_mem>> -> memref<1x1x!tpu.dma_semaphore, #tpu.memory_space<semaphore_mem>>
        %159 = tpu.memref_squeeze %158 : memref<1x1x!tpu.dma_semaphore, #tpu.memory_space<semaphore_mem>> -> memref<!tpu.dma_semaphore, #tpu.memory_space<semaphore_mem>>
        tpu.enqueue_dma source(%155 : memref<1x128xf32, #tpu.memory_space<any>>) target(%157 : memref<1x128xf32, #tpu.memory_space<vmem>>) target_semaphore(%159 : memref<!tpu.dma_semaphore, #tpu.memory_space<semaphore_mem>>)
        %c7_i32 = arith.constant 7 : i32
        %160 = arith.addi %40, %c7_i32 : i32
        %161 = arith.addi %36, %160 : i32
        %162 = arith.index_cast %161 : i32 to index
        %163 = memref.load %arg1[%162] : memref<128xi32, #tpu.memory_space<smem>>
        %164 = arith.addi %36, %160 : i32
        %165 = arith.index_cast %164 : i32 to index
        %166 = memref.load %arg2[%165] : memref<128xi32, #tpu.memory_space<smem>>
        %c0_i32_73 = arith.constant 0 : i32
        %c0_i32_74 = arith.constant 0 : i32
        %167 = tpu.memref_slice %arg4[%163, %c0_i32_74] : memref<16x128xf32, #tpu.memory_space<any>> -> memref<1x128xf32, #tpu.memory_space<any>>
        %c0_i32_75 = arith.constant 0 : i32
        %168 = tpu.memref_slice %arg7[%35, %160, %c0_i32_75] : memref<2x128x128xf32, #tpu.memory_space<vmem>> -> memref<1x1x128xf32, #tpu.memory_space<vmem>>
        %169 = tpu.memref_squeeze %168 : memref<1x1x128xf32, #tpu.memory_space<vmem>> -> memref<1x128xf32, #tpu.memory_space<vmem>>
        %170 = tpu.memref_slice %arg9[%35, %c0_i32_73] : memref<2x2x!tpu.dma_semaphore, #tpu.memory_space<semaphore_mem>> -> memref<1x1x!tpu.dma_semaphore, #tpu.memory_space<semaphore_mem>>
        %171 = tpu.memref_squeeze %170 : memref<1x1x!tpu.dma_semaphore, #tpu.memory_space<semaphore_mem>> -> memref<!tpu.dma_semaphore, #tpu.memory_space<semaphore_mem>>
        tpu.enqueue_dma source(%167 : memref<1x128xf32, #tpu.memory_space<any>>) target(%169 : memref<1x128xf32, #tpu.memory_space<vmem>>) target_semaphore(%171 : memref<!tpu.dma_semaphore, #tpu.memory_space<semaphore_mem>>)
        %c1_i32_76 = arith.constant 1 : i32
        %c0_i32_77 = arith.constant 0 : i32
        %172 = tpu.memref_slice %arg5[%166, %c0_i32_77] : memref<24x128xf32, #tpu.memory_space<any>> -> memref<1x128xf32, #tpu.memory_space<any>>
        %c0_i32_78 = arith.constant 0 : i32
        %173 = tpu.memref_slice %arg8[%35, %160, %c0_i32_78] : memref<2x128x128xf32, #tpu.memory_space<vmem>> -> memref<1x1x128xf32, #tpu.memory_space<vmem>>
        %174 = tpu.memref_squeeze %173 : memref<1x1x128xf32, #tpu.memory_space<vmem>> -> memref<1x128xf32, #tpu.memory_space<vmem>>
        %175 = tpu.memref_slice %arg9[%35, %c1_i32_76] : memref<2x2x!tpu.dma_semaphore, #tpu.memory_space<semaphore_mem>> -> memref<1x1x!tpu.dma_semaphore, #tpu.memory_space<semaphore_mem>>
        %176 = tpu.memref_squeeze %175 : memref<1x1x!tpu.dma_semaphore, #tpu.memory_space<semaphore_mem>> -> memref<!tpu.dma_semaphore, #tpu.memory_space<semaphore_mem>>
        tpu.enqueue_dma source(%172 : memref<1x128xf32, #tpu.memory_space<any>>) target(%174 : memref<1x128xf32, #tpu.memory_space<vmem>>) target_semaphore(%176 : memref<!tpu.dma_semaphore, #tpu.memory_space<semaphore_mem>>)
      }
      %c16_i32_26 = arith.constant 16 : i32
    } else {
    }
    %c0_i32_5 = arith.constant 0 : i32
    %c0_i32_6 = arith.constant 0 : i32
    %c0_i32_7 = arith.constant 0 : i32
    %9 = tpu.memref_slice %arg7[%0, %c0_i32_6, %c0_i32_7] : memref<2x128x128xf32, #tpu.memory_space<vmem>> -> memref<1x128x128xf32, #tpu.memory_space<vmem>>
    %10 = tpu.memref_squeeze %9 : memref<1x128x128xf32, #tpu.memory_space<vmem>> -> memref<128x128xf32, #tpu.memory_space<vmem>>
    %c0_i32_8 = arith.constant 0 : i32
    %c0_i32_9 = arith.constant 0 : i32
    %11 = tpu.memref_slice %arg7[%0, %c0_i32_8, %c0_i32_9] : memref<2x128x128xf32, #tpu.memory_space<vmem>> -> memref<1x128x128xf32, #tpu.memory_space<vmem>>
    %12 = tpu.memref_squeeze %11 : memref<1x128x128xf32, #tpu.memory_space<vmem>> -> memref<128x128xf32, #tpu.memory_space<vmem>>
    %13 = tpu.memref_slice %arg9[%0, %c0_i32_5] : memref<2x2x!tpu.dma_semaphore, #tpu.memory_space<semaphore_mem>> -> memref<1x1x!tpu.dma_semaphore, #tpu.memory_space<semaphore_mem>>
    %14 = tpu.memref_squeeze %13 : memref<1x1x!tpu.dma_semaphore, #tpu.memory_space<semaphore_mem>> -> memref<!tpu.dma_semaphore, #tpu.memory_space<semaphore_mem>>
    tpu.wait_dma2 semaphore(%14 : memref<!tpu.dma_semaphore, #tpu.memory_space<semaphore_mem>>) src(%10 : memref<128x128xf32, #tpu.memory_space<vmem>>) dst(%12 : memref<128x128xf32, #tpu.memory_space<vmem>>)
    %c1_i32_10 = arith.constant 1 : i32
    %c0_i32_11 = arith.constant 0 : i32
    %c0_i32_12 = arith.constant 0 : i32
    %15 = tpu.memref_slice %arg8[%0, %c0_i32_11, %c0_i32_12] : memref<2x128x128xf32, #tpu.memory_space<vmem>> -> memref<1x128x128xf32, #tpu.memory_space<vmem>>
    %16 = tpu.memref_squeeze %15 : memref<1x128x128xf32, #tpu.memory_space<vmem>> -> memref<128x128xf32, #tpu.memory_space<vmem>>
    %c0_i32_13 = arith.constant 0 : i32
    %c0_i32_14 = arith.constant 0 : i32
    %17 = tpu.memref_slice %arg8[%0, %c0_i32_13, %c0_i32_14] : memref<2x128x128xf32, #tpu.memory_space<vmem>> -> memref<1x128x128xf32, #tpu.memory_space<vmem>>
    %18 = tpu.memref_squeeze %17 : memref<1x128x128xf32, #tpu.memory_space<vmem>> -> memref<128x128xf32, #tpu.memory_space<vmem>>
    %19 = tpu.memref_slice %arg9[%0, %c1_i32_10] : memref<2x2x!tpu.dma_semaphore, #tpu.memory_space<semaphore_mem>> -> memref<1x1x!tpu.dma_semaphore, #tpu.memory_space<semaphore_mem>>
    %20 = tpu.memref_squeeze %19 : memref<1x1x!tpu.dma_semaphore, #tpu.memory_space<semaphore_mem>> -> memref<!tpu.dma_semaphore, #tpu.memory_space<semaphore_mem>>
    tpu.wait_dma2 semaphore(%20 : memref<!tpu.dma_semaphore, #tpu.memory_space<semaphore_mem>>) src(%16 : memref<128x128xf32, #tpu.memory_space<vmem>>) dst(%18 : memref<128x128xf32, #tpu.memory_space<vmem>>)
    %21 = arith.index_cast %0 : i32 to index
    %c0_15 = arith.constant 0 : index
    %c0_16 = arith.constant 0 : index
    %22 = vector.load %arg7[%21, %c0_15, %c0_16] : memref<2x128x128xf32, #tpu.memory_space<vmem>>, vector<1x128x128xf32>
    %23 = vector.shape_cast %22 : vector<1x128x128xf32> to vector<128x128xf32>
    %24 = arith.index_cast %0 : i32 to index
    %c0_17 = arith.constant 0 : index
    %c0_18 = arith.constant 0 : index
    %25 = vector.load %arg8[%24, %c0_17, %c0_18] : memref<2x128x128xf32, #tpu.memory_space<vmem>>, vector<1x128x128xf32>
    %26 = vector.shape_cast %25 : vector<1x128x128xf32> to vector<128x128xf32>
    %27 = arith.mulf %23, %26 : vector<128x128xf32>
    %cst = arith.constant dense<0.000000e+00> : vector<128xf32>
    %28 = vector.multi_reduction <add>, %27, %cst [1] : vector<128x128xf32> to vector<128xf32>
    %29 = vector.broadcast %1 : f32 to vector<128xf32>
    %30 = arith.addf %29, %28 : vector<128xf32>
    %31 = vector.shape_cast %30 : vector<128xf32> to vector<1x128xf32>
    %c0_19 = arith.constant 0 : index
    %c0_20 = arith.constant 0 : index
    %32 = vector.load %arg6[%c0_19, %c0_20] : memref<1x128xf32, #tpu.memory_space<vmem>>, vector<1x128xf32>
    tpu.vector_store %arg6[%c0_19, %c0_20], %31 {strides = array<i32>} : memref<1x128xf32, #tpu.memory_space<vmem>>, vector<1x128xf32>,
    return
  }
  func.func @transform_0(%arg0: i32, %arg1: memref<128xi32, #tpu.memory_space<smem>>, %arg2: memref<128xi32, #tpu.memory_space<smem>>) -> (i32, i32) {
    %c0_i32 = arith.constant 0 : i32
    %c0_i32_0 = arith.constant 0 : i32
    %c0_i32_1 = arith.constant 0 : i32
    return %c0_i32, %c0_i32_0 : i32, i32
  }
  func.func @transform_3(%arg0: i32, %arg1: memref<128xi32, #tpu.memory_space<smem>>, %arg2: memref<128xi32, #tpu.memory_space<smem>>) -> (i32, i32) {
    %c0_i32 = arith.constant 0 : i32
    %c0_i32_0 = arith.constant 0 : i32
    return %arg0, %c0_i32 : i32, i32
  }
}

</mosaic_0001>

<llo_original>
// kernel: tpu_custom_call.1
$region0: #{tpu_custom_call.1}
  #allocation0 [shape = 'u32[]', space=smem, size = 0x4, offset = 0x4, fixed_abs, tag = 'smem constant byte address 0x4 - core index']
  #allocation1 [shape = 'u32[144,128]{1,0:T(1,128)}', space=vmem, size = 0x12000, scoped, tag = 'internal scratch']
  #allocation2 [shape = 'f32[2,128,128]{2,1,0:T(8,128)}', space=vmem, size = 0x20000, scoped, tag = 'scratch operand']
  #allocation3 [shape = 'f32[2,128,128]{2,1,0:T(8,128)}', space=vmem, size = 0x20000, scoped, tag = 'scratch operand']
  #allocation4 [shape = 's32[4]{0}', space=sflag, size = 0x10, scoped, tag = 'scratch operand']
  #allocation5 [shape = 's32[1]{0}', space=sflag, size = 0x4, scoped, tag = 'scoped memory for tpu_custom_call.1']
  #allocation6 [shape = 'u8[512]{0}', space=smem, size = 0x200, scoped, tag = 'prefetched SMEM operand 0']
  #allocation7 [shape = 'u8[512]{0}', space=smem, size = 0x200, scoped, tag = 'prefetched SMEM operand 1']
  #allocation8 [shape = 'f32[1,1]{1,0:T(1,128)S(6)}', space=smem, size = 0x200, scoped, tag = 'scoped memory for tpu_custom_call.1']
  #allocation11 [shape = 's32[]', space=sflag, size = 0x4, offset = 0, fixed_abs, tag = 'sflag constant byte address 0x0 - dummy sync flag']
  #allocation12 [shape = 's32[]', space=sflag, size = 0x4, offset = 0, fixed_abs, tag = 'sflag constant byte address 0x0 - dummy sync flag']
  #allocation13 [shape = 'u32[]', space=smem, size = 0x4, offset = 0x44, fixed_abs, tag = 'smem constant byte address 0x44 - assertion arg 0']
  #allocation14 [shape = 'u32[]', space=smem, size = 0x4, offset = 0x48, fixed_abs, tag = 'smem constant byte address 0x48 - assertion arg 1']
  #allocation15 [shape = 's32[]', space=sflag, size = 0x4, offset = 0, fixed_abs, tag = 'sflag constant byte address 0x0 - dummy sync flag']
  #allocation16 [shape = 's32[]', space=sflag, size = 0x4, offset = 0, fixed_abs, tag = 'sflag constant byte address 0x0 - dummy sync flag']
  #allocation17 [shape = 's32[]', space=sflag, size = 0x4, offset = 0, fixed_abs, tag = 'sflag constant byte address 0x0 - dummy sync flag']
  #allocation18 [shape = 's32[]', space=sflag, size = 0x4, offset = 0, fixed_abs, tag = 'sflag constant byte address 0x0 - dummy sync flag']
  #allocation19 [shape = 's32[]', space=sflag, size = 0x4, offset = 0, fixed_abs, tag = 'sflag constant byte address 0x0 - dummy sync flag']
  #allocation20 [shape = 's32[]', space=sflag, size = 0x4, offset = 0, fixed_abs, tag = 'sflag constant byte address 0x0 - dummy sync flag']
  #allocation21 [shape = 's32[]', space=sflag, size = 0x4, offset = 0, fixed_abs, tag = 'sflag constant byte address 0x0 - dummy sync flag']
  #allocation22 [shape = 's32[]', space=sflag, size = 0x4, offset = 0, fixed_abs, tag = 'sflag constant byte address 0x0 - dummy sync flag']
  #allocation23 [shape = 's32[]', space=sflag, size = 0x4, offset = 0, fixed_abs, tag = 'sflag constant byte address 0x0 - dummy sync flag']
  #allocation24 [shape = 's32[]', space=sflag, size = 0x4, offset = 0, fixed_abs, tag = 'sflag constant byte address 0x0 - dummy sync flag']
  #allocation25 [shape = 's32[]', space=sflag, size = 0x4, offset = 0, fixed_abs, tag = 'sflag constant byte address 0x0 - dummy sync flag']
  #allocation26 [shape = 's32[]', space=sflag, size = 0x4, offset = 0, fixed_abs, tag = 'sflag constant byte address 0x0 - dummy sync flag']
  #allocation27 [shape = 's32[]', space=sflag, size = 0x4, offset = 0, fixed_abs, tag = 'sflag constant byte address 0x0 - dummy sync flag']
  #allocation28 [shape = 's32[]', space=sflag, size = 0x4, offset = 0, fixed_abs, tag = 'sflag constant byte address 0x0 - dummy sync flag']
  #allocation29 [shape = 's32[]', space=sflag, size = 0x4, offset = 0, fixed_abs, tag = 'sflag constant byte address 0x0 - dummy sync flag']
  #allocation30 [shape = 's32[]', space=sflag, size = 0x4, offset = 0, fixed_abs, tag = 'sflag constant byte address 0x0 - dummy sync flag']
  #allocation31 [shape = 's32[]', space=sflag, size = 0x4, offset = 0, fixed_abs, tag = 'sflag constant byte address 0x0 - dummy sync flag']
  #allocation32 [shape = 's32[]', space=sflag, size = 0x4, offset = 0, fixed_abs, tag = 'sflag constant byte address 0x0 - dummy sync flag']
  #allocation33 [shape = 's32[]', space=sflag, size = 0x4, offset = 0, fixed_abs, tag = 'sflag constant byte address 0x0 - dummy sync flag']
  #allocation34 [shape = 's32[]', space=sflag, size = 0x4, offset = 0, fixed_abs, tag = 'sflag constant byte address 0x0 - dummy sync flag']
  #allocation35 [shape = 's32[]', space=sflag, size = 0x4, offset = 0, fixed_abs, tag = 'sflag constant byte address 0x0 - dummy sync flag']
  #allocation36 [shape = 's32[]', space=sflag, size = 0x4, offset = 0, fixed_abs, tag = 'sflag constant byte address 0x0 - dummy sync flag']
  #allocation37 [shape = 's32[]', space=sflag, size = 0x4, offset = 0, fixed_abs, tag = 'sflag constant byte address 0x0 - dummy sync flag']
  #allocation38 [shape = 's32[]', space=sflag, size = 0x4, offset = 0, fixed_abs, tag = 'sflag constant byte address 0x0 - dummy sync flag']
  #allocation39 [shape = 's32[]', space=sflag, size = 0x4, offset = 0, fixed_abs, tag = 'sflag constant byte address 0x0 - dummy sync flag']
  #allocation40 [shape = 's32[]', space=sflag, size = 0x4, offset = 0, fixed_abs, tag = 'sflag constant byte address 0x0 - dummy sync flag']
  #allocation41 [shape = 's32[]', space=sflag, size = 0x4, offset = 0, fixed_abs, tag = 'sflag constant byte address 0x0 - dummy sync flag']
  #allocation42 [shape = 's32[]', space=sflag, size = 0x4, offset = 0, fixed_abs, tag = 'sflag constant byte address 0x0 - dummy sync flag']
  #allocation43 [shape = 's32[]', space=sflag, size = 0x4, offset = 0, fixed_abs, tag = 'sflag constant byte address 0x0 - dummy sync flag']
  #allocation44 [shape = 's32[]', space=sflag, size = 0x4, offset = 0, fixed_abs, tag = 'sflag constant byte address 0x0 - dummy sync flag']
  #allocation45 [shape = 's32[]', space=sflag, size = 0x4, offset = 0, fixed_abs, tag = 'sflag constant byte address 0x0 - dummy sync flag']
  #allocation46 [shape = 's32[]', space=sflag, size = 0x4, offset = 0, fixed_abs, tag = 'sflag constant byte address 0x0 - dummy sync flag']
  #allocation47 [shape = 's32[]', space=sflag, size = 0x4, offset = 0, fixed_abs, tag = 'sflag constant byte address 0x0 - dummy sync flag']
  #allocation48 [shape = 's32[]', space=sflag, size = 0x4, offset = 0, fixed_abs, tag = 'sflag constant byte address 0x0 - dummy sync flag']
  #allocation49 [shape = 's32[]', space=sflag, size = 0x4, offset = 0, fixed_abs, tag = 'sflag constant byte address 0x0 - dummy sync flag']
  #allocation50 [shape = 's32[]', space=sflag, size = 0x4, offset = 0, fixed_abs, tag = 'sflag constant byte address 0x0 - dummy sync flag']
  #allocation51 [shape = 's32[]', space=sflag, size = 0x4, offset = 0, fixed_abs, tag = 'sflag constant byte address 0x0 - dummy sync flag']
  #allocation52 [shape = 's32[]', space=sflag, size = 0x4, offset = 0, fixed_abs, tag = 'sflag constant byte address 0x0 - dummy sync flag']
  #allocation53 [shape = 's32[]', space=sflag, size = 0x4, offset = 0, fixed_abs, tag = 'sflag constant byte address 0x0 - dummy sync flag']
  #allocation54 [shape = 's32[]', space=sflag, size = 0x4, offset = 0, fixed_abs, tag = 'sflag constant byte address 0x0 - dummy sync flag']
  #allocation55 [shape = 's32[]', space=sflag, size = 0x4, offset = 0, fixed_abs, tag = 'sflag constant byte address 0x0 - dummy sync flag']
  #allocation56 [shape = 's32[]', space=sflag, size = 0x4, offset = 0, fixed_abs, tag = 'sflag constant byte address 0x0 - dummy sync flag']
  #allocation57 [shape = 's32[]', space=sflag, size = 0x4, offset = 0, fixed_abs, tag = 'sflag constant byte address 0x0 - dummy sync flag']
  #allocation58 [shape = 's32[]', space=sflag, size = 0x4, offset = 0, fixed_abs, tag = 'sflag constant byte address 0x0 - dummy sync flag']
  #allocation59 [shape = 's32[]', space=sflag, size = 0x4, offset = 0, fixed_abs, tag = 'sflag constant byte address 0x0 - dummy sync flag']
  #allocation60 [shape = 's32[]', space=sflag, size = 0x4, offset = 0, fixed_abs, tag = 'sflag constant byte address 0x0 - dummy sync flag']
  #allocation61 [shape = 's32[]', space=sflag, size = 0x4, offset = 0, fixed_abs, tag = 'sflag constant byte address 0x0 - dummy sync flag']
  #allocation62 [shape = 's32[]', space=sflag, size = 0x4, offset = 0, fixed_abs, tag = 'sflag constant byte address 0x0 - dummy sync flag']
  #allocation63 [shape = 's32[]', space=sflag, size = 0x4, offset = 0, fixed_abs, tag = 'sflag constant byte address 0x0 - dummy sync flag']
  #allocation64 [shape = 's32[]', space=sflag, size = 0x4, offset = 0, fixed_abs, tag = 'sflag constant byte address 0x0 - dummy sync flag']
  #allocation65 [shape = 's32[]', space=sflag, size = 0x4, offset = 0, fixed_abs, tag = 'sflag constant byte address 0x0 - dummy sync flag']
  #allocation66 [shape = 's32[]', space=sflag, size = 0x4, offset = 0, fixed_abs, tag = 'sflag constant byte address 0x0 - dummy sync flag']
  #allocation67 [shape = 's32[]', space=sflag, size = 0x4, offset = 0, fixed_abs, tag = 'sflag constant byte address 0x0 - dummy sync flag']
  #allocation68 [shape = 's32[]', space=sflag, size = 0x4, offset = 0, fixed_abs, tag = 'sflag constant byte address 0x0 - dummy sync flag']
  #allocation69 [shape = 's32[]', space=sflag, size = 0x4, offset = 0, fixed_abs, tag = 'sflag constant byte address 0x0 - dummy sync flag']
  #allocation70 [shape = 's32[]', space=sflag, size = 0x4, offset = 0, fixed_abs, tag = 'sflag constant byte address 0x0 - dummy sync flag']
  #allocation71 [shape = 's32[]', space=sflag, size = 0x4, offset = 0, fixed_abs, tag = 'sflag constant byte address 0x0 - dummy sync flag']
  #allocation72 [shape = 's32[]', space=sflag, size = 0x4, offset = 0, fixed_abs, tag = 'sflag constant byte address 0x0 - dummy sync flag']
  #allocation73 [shape = 's32[]', space=sflag, size = 0x4, offset = 0, fixed_abs, tag = 'sflag constant byte address 0x0 - dummy sync flag']
  #allocation74 [shape = 's32[]', space=sflag, size = 0x4, offset = 0, fixed_abs, tag = 'sflag constant byte address 0x0 - dummy sync flag']
  #allocation75 [shape = 's32[]', space=sflag, size = 0x4, offset = 0, fixed_abs, tag = 'sflag constant byte address 0x0 - dummy sync flag']
  #allocation76 [shape = 's32[]', space=sflag, size = 0x4, offset = 0, fixed_abs, tag = 'sflag constant byte address 0x0 - dummy sync flag']
  %s0 = inlined_call_operand.vmem [shape: s32[128], index: 0, kind: input, shape index: {}]
  %s1 = inlined_call_operand.vmem [shape: s32[128], index: 1, kind: input, shape index: {}]
  %s2 = inlined_call_operand.<no memory space> [shape: f32[1,1], index: 2, kind: input, shape index: {}]
  %s3 = inlined_call_operand.hbm [shape: f32[16,128], index: 3, kind: input, shape index: {}]
  %s4 = inlined_call_operand.hbm [shape: f32[24,128], index: 4, kind: input, shape index: {}]
  %s5 = inlined_call_operand.hbm [shape: f32[1,128], index: 5, kind: output, shape index: {}]
  %s6 = sld [smem:[#allocation0]]
  $region164: #{tpu_custom_call.1} parent=0
    _
  %s8 = ssub.s32 1, %s6
  %s9 = scalar_select 0, %s8, %s6
  %s10 = sshll.u32 %s0, 4
  %s11 = int_to_ptr.vmem [resolvable:$true] %s10
  %13 = dma.vmem_to_smem %s11, 16, [#allocation6], [#allocation5]
  %s14 = sshll.u32 %s1, 4
  %s15 = int_to_ptr.vmem [resolvable:$true] %s14
  %17 = dma.vmem_to_smem %s15, 16, [#allocation7], [#allocation5]
  %18 = sst [smem:[#allocation8]] %s2
  %19 = dma.done [#allocation5], 32
  %20 = sfence
  $region1: #{tpu_custom_call.1} parent=0
    #allocation9 [shape = 'u8[512]{0}', space=vmem, size = 0x400, scoped, tag = 'output window, operand 0, single buffered']
    #allocation10 [shape = 's32[1]{0}', space=sflag, size = 0x4, scoped, tag = 'scoped memory for tpu_custom_call.1']
    %21 = vsyncpa [#allocation10], 0
    // Predicated region
    $region2: #{tpu_custom_call.1} parent=1 // pred_check
      _
    $region3: #{tpu_custom_call.1} parent=1 // pred_check_branch
      %23 = sbr.rel (0) target = $region5
    $region4: #{tpu_custom_call.1} parent=1 // pred_region
      _
    $region5: #{tpu_custom_call.1} parent=1 // pred_fallthru
      _
    %s24 = sand.u32 0, 1
    %s25 = sld [smem:[#allocation8]]
    %p26 = scmp.eq.s32.totalorder 0, 0
    // Predicated region
    $region6: #{tpu_custom_call.1} parent=1 // pred_check
      %p27 = pneg %p26
    $region7: #{tpu_custom_call.1} parent=1 // pred_check_branch
      %29 = sbr.rel (%p27) target = $region9
    $region8: #{tpu_custom_call.1} parent=1 // pred_region
      loop: start=0, step=1, limit=16
      $region10: #{tpu_custom_call.1} parent=8 // loop_pre_header
        _
      $region11: #{tpu_custom_call.1} parent=8 // loop_header
        %s31 = sphi 0, %s35
        %p32 = scmp.ge.s32.totalorder %s31, 16
      $region12: #{tpu_custom_call.1} parent=8 // loop_header_branch
        %34 = sbr.rel (%p32) target = $region16
      $region13: #{tpu_custom_call.1} parent=8 // loop_body
        %s36 = smul.u32 %s31, 8
        %s37 = sld [smem:[#allocation6 + %s36]]
        %s38 = sld [smem:[#allocation7 + %s36]]
        %s39 = smul.addr %s37, 16
        %s40 = scalar_lea.hbm %s3, %s39
        %s41 = scalar_lea.vmem [#allocation2], %s36
        // Predicated region
        $region17: #{tpu_custom_call.1} parent=13 // pred_check
          _
        $region18: #{tpu_custom_call.1} parent=13 // pred_check_branch
          %43 = sbr.rel target = $region20
        $region19: #{tpu_custom_call.1} parent=13 // pred_region
          %44 = sst [smem:[#allocation13]] [#allocation12]
          %45 = sst [smem:[#allocation14]] [#allocation11]
        $region20: #{tpu_custom_call.1} parent=13 // pred_fallthru
          _
        %47 = shalt.err (0)
        %s49 = sshll.u32 %s41, 4
        %s50 = int_to_ptr.vmem [resolvable:$true] %s49
        %52 = dma.hbm_to_vmem [thread:$0]  %s40, 16, %s50, [#allocation4]
        %s53 = smul.addr %s38, 16
        %s54 = scalar_lea.hbm %s4, %s53
        %s55 = scalar_lea.vmem [#allocation3], %s36
        %s56 = scalar_lea.sflag [#allocation4], 1
        // Predicated region
        $region21: #{tpu_custom_call.1} parent=13 // pred_check
          _
        $region22: #{tpu_custom_call.1} parent=13 // pred_check_branch
          %58 = sbr.rel target = $region24
        $region23: #{tpu_custom_call.1} parent=13 // pred_region
          %59 = sst [smem:[#allocation13]] [#allocation16]
          %60 = sst [smem:[#allocation14]] [#allocation15]
        $region24: #{tpu_custom_call.1} parent=13 // pred_fallthru
          _
        %62 = shalt.err (0)
        %s64 = sshll.u32 %s55, 4
        %s65 = int_to_ptr.vmem [resolvable:$true] %s64
        %67 = dma.hbm_to_vmem [thread:$0]  %s54, 16, %s65, %s56
        %s68 = sadd.s32 %s36, 1
        %s69 = sld [smem:[#allocation6 + %s68]]
        %s70 = sld [smem:[#allocation7 + %s68]]
        %s71 = smul.addr %s69, 16
        %s72 = scalar_lea.hbm %s3, %s71
        %s73 = scalar_lea.vmem [#allocation2], %s68
        // Predicated region
        $region25: #{tpu_custom_call.1} parent=13 // pred_check
          _
        $region26: #{tpu_custom_call.1} parent=13 // pred_check_branch
          %75 = sbr.rel target = $region28
        $region27: #{tpu_custom_call.1} parent=13 // pred_region
          %76 = sst [smem:[#allocation13]] [#allocation18]
          %77 = sst [smem:[#allocation14]] [#allocation17]
        $region28: #{tpu_custom_call.1} parent=13 // pred_fallthru
          _
        %79 = shalt.err (0)
        %s81 = sshll.u32 %s73, 4
        %s82 = int_to_ptr.vmem [resolvable:$true] %s81
        %84 = dma.hbm_to_vmem [thread:$0]  %s72, 16, %s82, [#allocation4]
        %s85 = smul.addr %s70, 16
        %s86 = scalar_lea.hbm %s4, %s85
        %s87 = scalar_lea.vmem [#allocation3], %s68
        // Predicated region
        $region29: #{tpu_custom_call.1} parent=13 // pred_check
          _
        $region30: #{tpu_custom_call.1} parent=13 // pred_check_branch
          %89 = sbr.rel target = $region32
        $region31: #{tpu_custom_call.1} parent=13 // pred_region
          %90 = sst [smem:[#allocation13]] [#allocation20]
          %91 = sst [smem:[#allocation14]] [#allocation19]
        $region32: #{tpu_custom_call.1} parent=13 // pred_fallthru
          _
        %93 = shalt.err (0)
        %s95 = sshll.u32 %s87, 4
        %s96 = int_to_ptr.vmem [resolvable:$true] %s95
        %98 = dma.hbm_to_vmem [thread:$0]  %s86, 16, %s96, %s56
        %s99 = sadd.s32 %s36, 2
        %s100 = sld [smem:[#allocation6 + %s99]]
        %s101 = sld [smem:[#allocation7 + %s99]]
        %s102 = smul.addr %s100, 16
        %s103 = scalar_lea.hbm %s3, %s102
        %s104 = scalar_lea.vmem [#allocation2], %s99
        // Predicated region
        $region33: #{tpu_custom_call.1} parent=13 // pred_check
          _
        $region34: #{tpu_custom_call.1} parent=13 // pred_check_branch
          %106 = sbr.rel target = $region36
        $region35: #{tpu_custom_call.1} parent=13 // pred_region
          %107 = sst [smem:[#allocation13]] [#allocation22]
          %108 = sst [smem:[#allocation14]] [#allocation21]
        $region36: #{tpu_custom_call.1} parent=13 // pred_fallthru
          _
        %110 = shalt.err (0)
        %s112 = sshll.u32 %s104, 4
        %s113 = int_to_ptr.vmem [resolvable:$true] %s112
        %115 = dma.hbm_to_vmem [thread:$0]  %s103, 16, %s113, [#allocation4]
        %s116 = smul.addr %s101, 16
        %s117 = scalar_lea.hbm %s4, %s116
        %s118 = scalar_lea.vmem [#allocation3], %s99
        // Predicated region
        $region37: #{tpu_custom_call.1} parent=13 // pred_check
          _
        $region38: #{tpu_custom_call.1} parent=13 // pred_check_branch
          %120 = sbr.rel target = $region40
        $region39: #{tpu_custom_call.1} parent=13 // pred_region
          %121 = sst [smem:[#allocation13]] [#allocation24]
          %122 = sst [smem:[#allocation14]] [#allocation23]
        $region40: #{tpu_custom_call.1} parent=13 // pred_fallthru
          _
        %124 = shalt.err (0)
        %s126 = sshll.u32 %s118, 4
        %s127 = int_to_ptr.vmem [resolvable:$true] %s126
        %129 = dma.hbm_to_vmem [thread:$0]  %s117, 16, %s127, %s56
        %s130 = sadd.s32 %s36, 3
        %s131 = sld [smem:[#allocation6 + %s130]]
        %s132 = sld [smem:[#allocation7 + %s130]]
        %s133 = smul.addr %s131, 16
        %s134 = scalar_lea.hbm %s3, %s133
        %s135 = scalar_lea.vmem [#allocation2], %s130
        // Predicated region
        $region41: #{tpu_custom_call.1} parent=13 // pred_check
          _
        $region42: #{tpu_custom_call.1} parent=13 // pred_check_branch
          %137 = sbr.rel target = $region44
        $region43: #{tpu_custom_call.1} parent=13 // pred_region
          %138 = sst [smem:[#allocation13]] [#allocation26]
          %139 = sst [smem:[#allocation14]] [#allocation25]
        $region44: #{tpu_custom_call.1} parent=13 // pred_fallthru
          _
        %141 = shalt.err (0)
        %s143 = sshll.u32 %s135, 4
        %s144 = int_to_ptr.vmem [resolvable:$true] %s143
        %146 = dma.hbm_to_vmem [thread:$0]  %s134, 16, %s144, [#allocation4]
        %s147 = smul.addr %s132, 16
        %s148 = scalar_lea.hbm %s4, %s147
        %s149 = scalar_lea.vmem [#allocation3], %s130
        // Predicated region
        $region45: #{tpu_custom_call.1} parent=13 // pred_check
          _
        $region46: #{tpu_custom_call.1} parent=13 // pred_check_branch
          %151 = sbr.rel target = $region48
        $region47: #{tpu_custom_call.1} parent=13 // pred_region
          %152 = sst [smem:[#allocation13]] [#allocation28]
          %153 = sst [smem:[#allocation14]] [#allocation27]
        $region48: #{tpu_custom_call.1} parent=13 // pred_fallthru
          _
        %155 = shalt.err (0)
        %s157 = sshll.u32 %s149, 4
        %s158 = int_to_ptr.vmem [resolvable:$true] %s157
        %160 = dma.hbm_to_vmem [thread:$0]  %s148, 16, %s158, %s56
        %s161 = sadd.s32 %s36, 4
        %s162 = sld [smem:[#allocation6 + %s161]]
        %s163 = sld [smem:[#allocation7 + %s161]]
        %s164 = smul.addr %s162, 16
        %s165 = scalar_lea.hbm %s3, %s164
        %s166 = scalar_lea.vmem [#allocation2], %s161
        // Predicated region
        $region49: #{tpu_custom_call.1} parent=13 // pred_check
          _
        $region50: #{tpu_custom_call.1} parent=13 // pred_check_branch
          %168 = sbr.rel target = $region52
        $region51: #{tpu_custom_call.1} parent=13 // pred_region
          %169 = sst [smem:[#allocation13]] [#allocation30]
          %170 = sst [smem:[#allocation14]] [#allocation29]
        $region52: #{tpu_custom_call.1} parent=13 // pred_fallthru
          _
        %172 = shalt.err (0)
        %s174 = sshll.u32 %s166, 4
        %s175 = int_to_ptr.vmem [resolvable:$true] %s174
        %177 = dma.hbm_to_vmem [thread:$0]  %s165, 16, %s175, [#allocation4]
        %s178 = smul.addr %s163, 16
        %s179 = scalar_lea.hbm %s4, %s178
        %s180 = scalar_lea.vmem [#allocation3], %s161
        // Predicated region
        $region53: #{tpu_custom_call.1} parent=13 // pred_check
          _
        $region54: #{tpu_custom_call.1} parent=13 // pred_check_branch
          %182 = sbr.rel target = $region56
        $region55: #{tpu_custom_call.1} parent=13 // pred_region
          %183 = sst [smem:[#allocation13]] [#allocation32]
          %184 = sst [smem:[#allocation14]] [#allocation31]
        $region56: #{tpu_custom_call.1} parent=13 // pred_fallthru
          _
        %186 = shalt.err (0)
        %s188 = sshll.u32 %s180, 4
        %s189 = int_to_ptr.vmem [resolvable:$true] %s188
        %191 = dma.hbm_to_vmem [thread:$0]  %s179, 16, %s189, %s56
        %s192 = sadd.s32 %s36, 5
        %s193 = sld [smem:[#allocation6 + %s192]]
        %s194 = sld [smem:[#allocation7 + %s192]]
        %s195 = smul.addr %s193, 16
        %s196 = scalar_lea.hbm %s3, %s195
        %s197 = scalar_lea.vmem [#allocation2], %s192
        // Predicated region
        $region57: #{tpu_custom_call.1} parent=13 // pred_check
          _
        $region58: #{tpu_custom_call.1} parent=13 // pred_check_branch
          %199 = sbr.rel target = $region60
        $region59: #{tpu_custom_call.1} parent=13 // pred_region
          %200 = sst [smem:[#allocation13]] [#allocation34]
          %201 = sst [smem:[#allocation14]] [#allocation33]
        $region60: #{tpu_custom_call.1} parent=13 // pred_fallthru
          _
        %203 = shalt.err (0)
        %s205 = sshll.u32 %s197, 4
        %s206 = int_to_ptr.vmem [resolvable:$true] %s205
        %208 = dma.hbm_to_vmem [thread:$0]  %s196, 16, %s206, [#allocation4]
        %s209 = smul.addr %s194, 16
        %s210 = scalar_lea.hbm %s4, %s209
        %s211 = scalar_lea.vmem [#allocation3], %s192
        // Predicated region
        $region61: #{tpu_custom_call.1} parent=13 // pred_check
          _
        $region62: #{tpu_custom_call.1} parent=13 // pred_check_branch
          %213 = sbr.rel target = $region64
        $region63: #{tpu_custom_call.1} parent=13 // pred_region
          %214 = sst [smem:[#allocation13]] [#allocation36]
          %215 = sst [smem:[#allocation14]] [#allocation35]
        $region64: #{tpu_custom_call.1} parent=13 // pred_fallthru
          _
        %217 = shalt.err (0)
        %s219 = sshll.u32 %s211, 4
        %s220 = int_to_ptr.vmem [resolvable:$true] %s219
        %222 = dma.hbm_to_vmem [thread:$0]  %s210, 16, %s220, %s56
        %s223 = sadd.s32 %s36, 6
        %s224 = sld [smem:[#allocation6 + %s223]]
        %s225 = sld [smem:[#allocation7 + %s223]]
        %s226 = smul.addr %s224, 16
        %s227 = scalar_lea.hbm %s3, %s226
        %s228 = scalar_lea.vmem [#allocation2], %s223
        // Predicated region
        $region65: #{tpu_custom_call.1} parent=13 // pred_check
          _
        $region66: #{tpu_custom_call.1} parent=13 // pred_check_branch
          %230 = sbr.rel target = $region68
        $region67: #{tpu_custom_call.1} parent=13 // pred_region
          %231 = sst [smem:[#allocation13]] [#allocation38]
          %232 = sst [smem:[#allocation14]] [#allocation37]
        $region68: #{tpu_custom_call.1} parent=13 // pred_fallthru
          _
        %234 = shalt.err (0)
        %s236 = sshll.u32 %s228, 4
        %s237 = int_to_ptr.vmem [resolvable:$true] %s236
        %239 = dma.hbm_to_vmem [thread:$0]  %s227, 16, %s237, [#allocation4]
        %s240 = smul.addr %s225, 16
        %s241 = scalar_lea.hbm %s4, %s240
        %s242 = scalar_lea.vmem [#allocation3], %s223
        // Predicated region
        $region69: #{tpu_custom_call.1} parent=13 // pred_check
          _
        $region70: #{tpu_custom_call.1} parent=13 // pred_check_branch
          %244 = sbr.rel target = $region72
        $region71: #{tpu_custom_call.1} parent=13 // pred_region
          %245 = sst [smem:[#allocation13]] [#allocation40]
          %246 = sst [smem:[#allocation14]] [#allocation39]
        $region72: #{tpu_custom_call.1} parent=13 // pred_fallthru
          _
        %248 = shalt.err (0)
        %s250 = sshll.u32 %s242, 4
        %s251 = int_to_ptr.vmem [resolvable:$true] %s250
        %253 = dma.hbm_to_vmem [thread:$0]  %s241, 16, %s251, %s56
        %s254 = sadd.s32 %s36, 7
        %s255 = sld [smem:[#allocation6 + %s254]]
        %s256 = sld [smem:[#allocation7 + %s254]]
        %s257 = smul.addr %s255, 16
        %s258 = scalar_lea.hbm %s3, %s257
        %s259 = scalar_lea.vmem [#allocation2], %s254
        // Predicated region
        $region73: #{tpu_custom_call.1} parent=13 // pred_check
          _
        $region74: #{tpu_custom_call.1} parent=13 // pred_check_branch
          %261 = sbr.rel target = $region76
        $region75: #{tpu_custom_call.1} parent=13 // pred_region
          %262 = sst [smem:[#allocation13]] [#allocation42]
          %263 = sst [smem:[#allocation14]] [#allocation41]
        $region76: #{tpu_custom_call.1} parent=13 // pred_fallthru
          _
        %265 = shalt.err (0)
        %s267 = sshll.u32 %s259, 4
        %s268 = int_to_ptr.vmem [resolvable:$true] %s267
        %270 = dma.hbm_to_vmem [thread:$0]  %s258, 16, %s268, [#allocation4]
        %s271 = smul.addr %s256, 16
        %s272 = scalar_lea.hbm %s4, %s271
        %s273 = scalar_lea.vmem [#allocation3], %s254
        // Predicated region
        $region77: #{tpu_custom_call.1} parent=13 // pred_check
          _
        $region78: #{tpu_custom_call.1} parent=13 // pred_check_branch
          %275 = sbr.rel target = $region80
        $region79: #{tpu_custom_call.1} parent=13 // pred_region
          %276 = sst [smem:[#allocation13]] [#allocation44]
          %277 = sst [smem:[#allocation14]] [#allocation43]
        $region80: #{tpu_custom_call.1} parent=13 // pred_fallthru
          _
        %279 = shalt.err (0)
        %s281 = sshll.u32 %s273, 4
        %s282 = int_to_ptr.vmem [resolvable:$true] %s281
        %284 = dma.hbm_to_vmem [thread:$0]  %s272, 16, %s282, %s56
      $region14: #{tpu_custom_call.1} parent=8 // loop_footer
        %s35 = sadd.s32 1, %s31
      $region15: #{tpu_custom_call.1} parent=8 // loop_footer_branch
        %30 = sbr.rel target = $region11
      $region16: #{tpu_custom_call.1} parent=8 // loop_exit
        _
    $region9: #{tpu_custom_call.1} parent=1 // pred_fallthru
      _
    %s285 = sadd.s32 0, 1
    %p286 = scmp.lt.s32.totalorder %s285, 1
    // Predicated region
    $region81: #{tpu_custom_call.1} parent=1 // pred_check
      %p287 = pneg %p286
    $region82: #{tpu_custom_call.1} parent=1 // pred_check_branch
      %289 = sbr.rel (%p287) target = $region84
    $region83: #{tpu_custom_call.1} parent=1 // pred_region
      %s290 = sand.u32 %s285, 1
      %s291 = smul.u32 %s285, 128
      loop: start=0, step=1, limit=16
      $region85: #{tpu_custom_call.1} parent=83 // loop_pre_header
        _
      $region86: #{tpu_custom_call.1} parent=83 // loop_header
        %s293 = sphi 0, %s297
        %p294 = scmp.ge.s32.totalorder %s293, 16
      $region87: #{tpu_custom_call.1} parent=83 // loop_header_branch
        %296 = sbr.rel (%p294) target = $region91
      $region88: #{tpu_custom_call.1} parent=83 // loop_body
        %s298 = smul.u32 %s293, 8
        %s299 = sadd.s32 %s291, %s298
        %s300 = sld [smem:[#allocation6 + %s299]]
        %s301 = sld [smem:[#allocation7 + %s299]]
        %s302 = smul.addr %s300, 16
        %s303 = scalar_lea.hbm %s3, %s302
        %s304 = smul.u32 %s290, 128
        %s305 = sadd.s32 %s298, %s304
        %s306 = scalar_lea.vmem [#allocation2], %s305
        %s307 = smul.u32 %s290, 2
        %s308 = scalar_lea.sflag [#allocation4], %s307
        // Predicated region
        $region92: #{tpu_custom_call.1} parent=88 // pred_check
          _
        $region93: #{tpu_custom_call.1} parent=88 // pred_check_branch
          %310 = sbr.rel target = $region95
        $region94: #{tpu_custom_call.1} parent=88 // pred_region
          %311 = sst [smem:[#allocation13]] [#allocation46]
          %312 = sst [smem:[#allocation14]] [#allocation45]
        $region95: #{tpu_custom_call.1} parent=88 // pred_fallthru
          _
        %314 = shalt.err (0)
        %s316 = sshll.u32 %s306, 4
        %s317 = int_to_ptr.vmem [resolvable:$true] %s316
        %319 = dma.hbm_to_vmem [thread:$0]  %s303, 16, %s317, %s308
        %s320 = smul.addr %s301, 16
        %s321 = scalar_lea.hbm %s4, %s320
        %s322 = scalar_lea.vmem [#allocation3], %s305
        %s323 = sadd.s32 1, %s307
        %s324 = scalar_lea.sflag [#allocation4], %s323
        // Predicated region
        $region96: #{tpu_custom_call.1} parent=88 // pred_check
          _
        $region97: #{tpu_custom_call.1} parent=88 // pred_check_branch
          %326 = sbr.rel target = $region99
        $region98: #{tpu_custom_call.1} parent=88 // pred_region
          %327 = sst [smem:[#allocation13]] [#allocation48]
          %328 = sst [smem:[#allocation14]] [#allocation47]
        $region99: #{tpu_custom_call.1} parent=88 // pred_fallthru
          _
        %330 = shalt.err (0)
        %s332 = sshll.u32 %s322, 4
        %s333 = int_to_ptr.vmem [resolvable:$true] %s332
        %335 = dma.hbm_to_vmem [thread:$0]  %s321, 16, %s333, %s324
        %s336 = sadd.s32 %s298, 1
        %s337 = sadd.s32 %s291, %s336
        %s338 = sld [smem:[#allocation6 + %s337]]
        %s339 = sld [smem:[#allocation7 + %s337]]
        %s340 = smul.addr %s338, 16
        %s341 = scalar_lea.hbm %s3, %s340
        %s342 = sadd.s32 %s336, %s304
        %s343 = scalar_lea.vmem [#allocation2], %s342
        // Predicated region
        $region100: #{tpu_custom_call.1} parent=88 // pred_check
          _
        $region101: #{tpu_custom_call.1} parent=88 // pred_check_branch
          %345 = sbr.rel target = $region103
        $region102: #{tpu_custom_call.1} parent=88 // pred_region
          %346 = sst [smem:[#allocation13]] [#allocation50]
          %347 = sst [smem:[#allocation14]] [#allocation49]
        $region103: #{tpu_custom_call.1} parent=88 // pred_fallthru
          _
        %349 = shalt.err (0)
        %s351 = sshll.u32 %s343, 4
        %s352 = int_to_ptr.vmem [resolvable:$true] %s351
        %354 = dma.hbm_to_vmem [thread:$0]  %s341, 16, %s352, %s308
        %s355 = smul.addr %s339, 16
        %s356 = scalar_lea.hbm %s4, %s355
        %s357 = scalar_lea.vmem [#allocation3], %s342
        // Predicated region
        $region104: #{tpu_custom_call.1} parent=88 // pred_check
          _
        $region105: #{tpu_custom_call.1} parent=88 // pred_check_branch
          %359 = sbr.rel target = $region107
        $region106: #{tpu_custom_call.1} parent=88 // pred_region
          %360 = sst [smem:[#allocation13]] [#allocation52]
          %361 = sst [smem:[#allocation14]] [#allocation51]
        $region107: #{tpu_custom_call.1} parent=88 // pred_fallthru
          _
        %363 = shalt.err (0)
        %s365 = sshll.u32 %s357, 4
        %s366 = int_to_ptr.vmem [resolvable:$true] %s365
        %368 = dma.hbm_to_vmem [thread:$0]  %s356, 16, %s366, %s324
        %s369 = sadd.s32 %s298, 2
        %s370 = sadd.s32 %s291, %s369
        %s371 = sld [smem:[#allocation6 + %s370]]
        %s372 = sld [smem:[#allocation7 + %s370]]
        %s373 = smul.addr %s371, 16
        %s374 = scalar_lea.hbm %s3, %s373
        %s375 = sadd.s32 %s369, %s304
        %s376 = scalar_lea.vmem [#allocation2], %s375
        // Predicated region
        $region108: #{tpu_custom_call.1} parent=88 // pred_check
          _
        $region109: #{tpu_custom_call.1} parent=88 // pred_check_branch
          %378 = sbr.rel target = $region111
        $region110: #{tpu_custom_call.1} parent=88 // pred_region
          %379 = sst [smem:[#allocation13]] [#allocation54]
          %380 = sst [smem:[#allocation14]] [#allocation53]
        $region111: #{tpu_custom_call.1} parent=88 // pred_fallthru
          _
        %382 = shalt.err (0)
        %s384 = sshll.u32 %s376, 4
        %s385 = int_to_ptr.vmem [resolvable:$true] %s384
        %387 = dma.hbm_to_vmem [thread:$0]  %s374, 16, %s385, %s308
        %s388 = smul.addr %s372, 16
        %s389 = scalar_lea.hbm %s4, %s388
        %s390 = scalar_lea.vmem [#allocation3], %s375
        // Predicated region
        $region112: #{tpu_custom_call.1} parent=88 // pred_check
          _
        $region113: #{tpu_custom_call.1} parent=88 // pred_check_branch
          %392 = sbr.rel target = $region115
        $region114: #{tpu_custom_call.1} parent=88 // pred_region
          %393 = sst [smem:[#allocation13]] [#allocation56]
          %394 = sst [smem:[#allocation14]] [#allocation55]
        $region115: #{tpu_custom_call.1} parent=88 // pred_fallthru
          _
        %396 = shalt.err (0)
        %s398 = sshll.u32 %s390, 4
        %s399 = int_to_ptr.vmem [resolvable:$true] %s398
        %401 = dma.hbm_to_vmem [thread:$0]  %s389, 16, %s399, %s324
        %s402 = sadd.s32 %s298, 3
        %s403 = sadd.s32 %s291, %s402
        %s404 = sld [smem:[#allocation6 + %s403]]
        %s405 = sld [smem:[#allocation7 + %s403]]
        %s406 = smul.addr %s404, 16
        %s407 = scalar_lea.hbm %s3, %s406
        %s408 = sadd.s32 %s402, %s304
        %s409 = scalar_lea.vmem [#allocation2], %s408
        // Predicated region
        $region116: #{tpu_custom_call.1} parent=88 // pred_check
          _
        $region117: #{tpu_custom_call.1} parent=88 // pred_check_branch
          %411 = sbr.rel target = $region119
        $region118: #{tpu_custom_call.1} parent=88 // pred_region
          %412 = sst [smem:[#allocation13]] [#allocation58]
          %413 = sst [smem:[#allocation14]] [#allocation57]
        $region119: #{tpu_custom_call.1} parent=88 // pred_fallthru
          _
        %415 = shalt.err (0)
        %s417 = sshll.u32 %s409, 4
        %s418 = int_to_ptr.vmem [resolvable:$true] %s417
        %420 = dma.hbm_to_vmem [thread:$0]  %s407, 16, %s418, %s308
        %s421 = smul.addr %s405, 16
        %s422 = scalar_lea.hbm %s4, %s421
        %s423 = scalar_lea.vmem [#allocation3], %s408
        // Predicated region
        $region120: #{tpu_custom_call.1} parent=88 // pred_check
          _
        $region121: #{tpu_custom_call.1} parent=88 // pred_check_branch
          %425 = sbr.rel target = $region123
        $region122: #{tpu_custom_call.1} parent=88 // pred_region
          %426 = sst [smem:[#allocation13]] [#allocation60]
          %427 = sst [smem:[#allocation14]] [#allocation59]
        $region123: #{tpu_custom_call.1} parent=88 // pred_fallthru
          _
        %429 = shalt.err (0)
        %s431 = sshll.u32 %s423, 4
        %s432 = int_to_ptr.vmem [resolvable:$true] %s431
        %434 = dma.hbm_to_vmem [thread:$0]  %s422, 16, %s432, %s324
        %s435 = sadd.s32 %s298, 4
        %s436 = sadd.s32 %s291, %s435
        %s437 = sld [smem:[#allocation6 + %s436]]
        %s438 = sld [smem:[#allocation7 + %s436]]
        %s439 = smul.addr %s437, 16
        %s440 = scalar_lea.hbm %s3, %s439
        %s441 = sadd.s32 %s435, %s304
        %s442 = scalar_lea.vmem [#allocation2], %s441
        // Predicated region
        $region124: #{tpu_custom_call.1} parent=88 // pred_check
          _
        $region125: #{tpu_custom_call.1} parent=88 // pred_check_branch
          %444 = sbr.rel target = $region127
        $region126: #{tpu_custom_call.1} parent=88 // pred_region
          %445 = sst [smem:[#allocation13]] [#allocation62]
          %446 = sst [smem:[#allocation14]] [#allocation61]
        $region127: #{tpu_custom_call.1} parent=88 // pred_fallthru
          _
        %448 = shalt.err (0)
        %s450 = sshll.u32 %s442, 4
        %s451 = int_to_ptr.vmem [resolvable:$true] %s450
        %453 = dma.hbm_to_vmem [thread:$0]  %s440, 16, %s451, %s308
        %s454 = smul.addr %s438, 16
        %s455 = scalar_lea.hbm %s4, %s454
        %s456 = scalar_lea.vmem [#allocation3], %s441
        // Predicated region
        $region128: #{tpu_custom_call.1} parent=88 // pred_check
          _
        $region129: #{tpu_custom_call.1} parent=88 // pred_check_branch
          %458 = sbr.rel target = $region131
        $region130: #{tpu_custom_call.1} parent=88 // pred_region
          %459 = sst [smem:[#allocation13]] [#allocation64]
          %460 = sst [smem:[#allocation14]] [#allocation63]
        $region131: #{tpu_custom_call.1} parent=88 // pred_fallthru
          _
        %462 = shalt.err (0)
        %s464 = sshll.u32 %s456, 4
        %s465 = int_to_ptr.vmem [resolvable:$true] %s464
        %467 = dma.hbm_to_vmem [thread:$0]  %s455, 16, %s465, %s324
        %s468 = sadd.s32 %s298, 5
        %s469 = sadd.s32 %s291, %s468
        %s470 = sld [smem:[#allocation6 + %s469]]
        %s471 = sld [smem:[#allocation7 + %s469]]
        %s472 = smul.addr %s470, 16
        %s473 = scalar_lea.hbm %s3, %s472
        %s474 = sadd.s32 %s468, %s304
        %s475 = scalar_lea.vmem [#allocation2], %s474
        // Predicated region
        $region132: #{tpu_custom_call.1} parent=88 // pred_check
          _
        $region133: #{tpu_custom_call.1} parent=88 // pred_check_branch
          %477 = sbr.rel target = $region135
        $region134: #{tpu_custom_call.1} parent=88 // pred_region
          %478 = sst [smem:[#allocation13]] [#allocation66]
          %479 = sst [smem:[#allocation14]] [#allocation65]
        $region135: #{tpu_custom_call.1} parent=88 // pred_fallthru
          _
        %481 = shalt.err (0)
        %s483 = sshll.u32 %s475, 4
        %s484 = int_to_ptr.vmem [resolvable:$true] %s483
        %486 = dma.hbm_to_vmem [thread:$0]  %s473, 16, %s484, %s308
        %s487 = smul.addr %s471, 16
        %s488 = scalar_lea.hbm %s4, %s487
        %s489 = scalar_lea.vmem [#allocation3], %s474
        // Predicated region
        $region136: #{tpu_custom_call.1} parent=88 // pred_check
          _
        $region137: #{tpu_custom_call.1} parent=88 // pred_check_branch
          %491 = sbr.rel target = $region139
        $region138: #{tpu_custom_call.1} parent=88 // pred_region
          %492 = sst [smem:[#allocation13]] [#allocation68]
          %493 = sst [smem:[#allocation14]] [#allocation67]
        $region139: #{tpu_custom_call.1} parent=88 // pred_fallthru
          _
        %495 = shalt.err (0)
        %s497 = sshll.u32 %s489, 4
        %s498 = int_to_ptr.vmem [resolvable:$true] %s497
        %500 = dma.hbm_to_vmem [thread:$0]  %s488, 16, %s498, %s324
        %s501 = sadd.s32 %s298, 6
        %s502 = sadd.s32 %s291, %s501
        %s503 = sld [smem:[#allocation6 + %s502]]
        %s504 = sld [smem:[#allocation7 + %s502]]
        %s505 = smul.addr %s503, 16
        %s506 = scalar_lea.hbm %s3, %s505
        %s507 = sadd.s32 %s501, %s304
        %s508 = scalar_lea.vmem [#allocation2], %s507
        // Predicated region
        $region140: #{tpu_custom_call.1} parent=88 // pred_check
          _
        $region141: #{tpu_custom_call.1} parent=88 // pred_check_branch
          %510 = sbr.rel target = $region143
        $region142: #{tpu_custom_call.1} parent=88 // pred_region
          %511 = sst [smem:[#allocation13]] [#allocation70]
          %512 = sst [smem:[#allocation14]] [#allocation69]
        $region143: #{tpu_custom_call.1} parent=88 // pred_fallthru
          _
        %514 = shalt.err (0)
        %s516 = sshll.u32 %s508, 4
        %s517 = int_to_ptr.vmem [resolvable:$true] %s516
        %519 = dma.hbm_to_vmem [thread:$0]  %s506, 16, %s517, %s308
        %s520 = smul.addr %s504, 16
        %s521 = scalar_lea.hbm %s4, %s520
        %s522 = scalar_lea.vmem [#allocation3], %s507
        // Predicated region
        $region144: #{tpu_custom_call.1} parent=88 // pred_check
          _
        $region145: #{tpu_custom_call.1} parent=88 // pred_check_branch
          %524 = sbr.rel target = $region147
        $region146: #{tpu_custom_call.1} parent=88 // pred_region
          %525 = sst [smem:[#allocation13]] [#allocation72]
          %526 = sst [smem:[#allocation14]] [#allocation71]
        $region147: #{tpu_custom_call.1} parent=88 // pred_fallthru
          _
        %528 = shalt.err (0)
        %s530 = sshll.u32 %s522, 4
        %s531 = int_to_ptr.vmem [resolvable:$true] %s530
        %533 = dma.hbm_to_vmem [thread:$0]  %s521, 16, %s531, %s324
        %s534 = sadd.s32 %s298, 7
        %s535 = sadd.s32 %s291, %s534
        %s536 = sld [smem:[#allocation6 + %s535]]
        %s537 = sld [smem:[#allocation7 + %s535]]
        %s538 = smul.addr %s536, 16
        %s539 = scalar_lea.hbm %s3, %s538
        %s540 = sadd.s32 %s534, %s304
        %s541 = scalar_lea.vmem [#allocation2], %s540
        // Predicated region
        $region148: #{tpu_custom_call.1} parent=88 // pred_check
          _
        $region149: #{tpu_custom_call.1} parent=88 // pred_check_branch
          %543 = sbr.rel target = $region151
        $region150: #{tpu_custom_call.1} parent=88 // pred_region
          %544 = sst [smem:[#allocation13]] [#allocation74]
          %545 = sst [smem:[#allocation14]] [#allocation73]
        $region151: #{tpu_custom_call.1} parent=88 // pred_fallthru
          _
        %547 = shalt.err (0)
        %s549 = sshll.u32 %s541, 4
        %s550 = int_to_ptr.vmem [resolvable:$true] %s549
        %552 = dma.hbm_to_vmem [thread:$0]  %s539, 16, %s550, %s308
        %s553 = smul.addr %s537, 16
        %s554 = scalar_lea.hbm %s4, %s553
        %s555 = scalar_lea.vmem [#allocation3], %s540
        // Predicated region
        $region152: #{tpu_custom_call.1} parent=88 // pred_check
          _
        $region153: #{tpu_custom_call.1} parent=88 // pred_check_branch
          %557 = sbr.rel target = $region155
        $region154: #{tpu_custom_call.1} parent=88 // pred_region
          %558 = sst [smem:[#allocation13]] [#allocation76]
          %559 = sst [smem:[#allocation14]] [#allocation75]
        $region155: #{tpu_custom_call.1} parent=88 // pred_fallthru
          _
        %561 = shalt.err (0)
        %s563 = sshll.u32 %s555, 4
        %s564 = int_to_ptr.vmem [resolvable:$true] %s563
        %566 = dma.hbm_to_vmem [thread:$0]  %s554, 16, %s564, %s324
      $region89: #{tpu_custom_call.1} parent=83 // loop_footer
        %s297 = sadd.s32 1, %s293
      $region90: #{tpu_custom_call.1} parent=83 // loop_footer_branch
        %292 = sbr.rel target = $region86
      $region91: #{tpu_custom_call.1} parent=83 // loop_exit
        _
    $region84: #{tpu_custom_call.1} parent=1 // pred_fallthru
      _
    %s567 = smul.u32 %s24, 128
    %s568 = scalar_lea.vmem [#allocation2], %s567
    %s569 = smul.u32 %s24, 2
    %s570 = scalar_lea.sflag [#allocation4], %s569
    %s571 = smul.u32 128, 1
    %s572 = sshll.u32 %s571, 4
    %573 = dma.done %s570, %s572
    %s574 = scalar_lea.vmem [#allocation3], %s567
    %s575 = sadd.s32 1, %s569
    %s576 = scalar_lea.sflag [#allocation4], %s575
    %s577 = sshll.u32 %s571, 4
    %578 = dma.done %s576, %s577
    %v579 = vld [vmem:[%s568] sm:$0xff]
    %v580 = vld [vmem:[%s568 + $0x8] sm:$0xff]
    %v581 = vld [vmem:[%s568 + $0x10] sm:$0xff]
    %v582 = vld [vmem:[%s568 + $0x18] sm:$0xff]
    %v583 = vld [vmem:[%s568 + $0x20] sm:$0xff]
    %v584 = vld [vmem:[%s568 + $0x28] sm:$0xff]
    %v585 = vld [vmem:[%s568 + $0x30] sm:$0xff]
    %v586 = vld [vmem:[%s568 + $0x38] sm:$0xff]
    %v587 = vld [vmem:[%s568 + $0x40] sm:$0xff]
    %v588 = vld [vmem:[%s568 + $0x48] sm:$0xff]
    %v589 = vld [vmem:[%s568 + $0x50] sm:$0xff]
    %v590 = vld [vmem:[%s568 + $0x58] sm:$0xff]
    %v591 = vld [vmem:[%s568 + $0x60] sm:$0xff]
    %v592 = vld [vmem:[%s568 + $0x68] sm:$0xff]
    %v593 = vld [vmem:[%s568 + $0x70] sm:$0xff]
    %v594 = vld [vmem:[%s568 + $0x78] sm:$0xff]
    %v595 = vld [vmem:[%s574] sm:$0xff]
    %v596 = vld [vmem:[%s574 + $0x8] sm:$0xff]
    %v597 = vld [vmem:[%s574 + $0x10] sm:$0xff]
    %v598 = vld [vmem:[%s574 + $0x18] sm:$0xff]
    %v599 = vld [vmem:[%s574 + $0x20] sm:$0xff]
    %v600 = vld [vmem:[%s574 + $0x28] sm:$0xff]
    %v601 = vld [vmem:[%s574 + $0x30] sm:$0xff]
    %v602 = vld [vmem:[%s574 + $0x38] sm:$0xff]
    %v603 = vld [vmem:[%s574 + $0x40] sm:$0xff]
    %v604 = vld [vmem:[%s574 + $0x48] sm:$0xff]
    %v605 = vld [vmem:[%s574 + $0x50] sm:$0xff]
    %v606 = vld [vmem:[%s574 + $0x58] sm:$0xff]
    %v607 = vld [vmem:[%s574 + $0x60] sm:$0xff]
    %v608 = vld [vmem:[%s574 + $0x68] sm:$0xff]
    %v609 = vld [vmem:[%s574 + $0x70] sm:$0xff]
    %v610 = vld [vmem:[%s574 + $0x78] sm:$0xff]
    %v611 = vmul.f32 %v579, %v595
    %v612 = vmul.f32 %v580, %v596
    %v613 = vmul.f32 %v581, %v597
    %v614 = vmul.f32 %v582, %v598
    %v615 = vmul.f32 %v583, %v599
    %v616 = vmul.f32 %v584, %v600
    %v617 = vmul.f32 %v585, %v601
    %v618 = vmul.f32 %v586, %v602
    %v619 = vmul.f32 %v587, %v603
    %v620 = vmul.f32 %v588, %v604
    %v621 = vmul.f32 %v589, %v605
    %v622 = vmul.f32 %v590, %v606
    %v623 = vmul.f32 %v591, %v607
    %v624 = vmul.f32 %v592, %v608
    %v625 = vmul.f32 %v593, %v609
    %v626 = vmul.f32 %v594, %v610
    %627 = vadd.xlane.f32.xlu0 %v611
    %v628 = vpop.xlane.xlu0 %627
    %629 = vadd.xlane.f32.xlu0 %v612
    %v630 = vpop.xlane.xlu0 %629
    %631 = vadd.xlane.f32.xlu0 %v613
    %v632 = vpop.xlane.xlu0 %631
    %633 = vadd.xlane.f32.xlu0 %v614
    %v634 = vpop.xlane.xlu0 %633
    %635 = vadd.xlane.f32.xlu0 %v615
    %v636 = vpop.xlane.xlu0 %635
    %637 = vadd.xlane.f32.xlu0 %v616
    %v638 = vpop.xlane.xlu0 %637
    %639 = vadd.xlane.f32.xlu0 %v617
    %v640 = vpop.xlane.xlu0 %639
    %641 = vadd.xlane.f32.xlu0 %v618
    %v642 = vpop.xlane.xlu0 %641
    %643 = vadd.xlane.f32.xlu0 %v619
    %v644 = vpop.xlane.xlu0 %643
    %645 = vadd.xlane.f32.xlu0 %v620
    %v646 = vpop.xlane.xlu0 %645
    %647 = vadd.xlane.f32.xlu0 %v621
    %v648 = vpop.xlane.xlu0 %647
    %649 = vadd.xlane.f32.xlu0 %v622
    %v650 = vpop.xlane.xlu0 %649
    %651 = vadd.xlane.f32.xlu0 %v623
    %v652 = vpop.xlane.xlu0 %651
    %653 = vadd.xlane.f32.xlu0 %v624
    %v654 = vpop.xlane.xlu0 %653
    %655 = vadd.xlane.f32.xlu0 %v625
    %v656 = vpop.xlane.xlu0 %655
    %657 = vadd.xlane.f32.xlu0 %v626
    %v658 = vpop.xlane.xlu0 %657
    %v659 = vstv %s25
    %v660 = vadd.f32 %v659, %v628
    %v661 = vadd.f32 %v659, %v630
    %v662 = vadd.f32 %v659, %v632
    %v663 = vadd.f32 %v659, %v634
    %v664 = vadd.f32 %v659, %v636
    %v665 = vadd.f32 %v659, %v638
    %v666 = vadd.f32 %v659, %v640
    %v667 = vadd.f32 %v659, %v642
    %v668 = vadd.f32 %v659, %v644
    %v669 = vadd.f32 %v659, %v646
    %v670 = vadd.f32 %v659, %v648
    %v671 = vadd.f32 %v659, %v650
    %v672 = vadd.f32 %v659, %v652
    %v673 = vadd.f32 %v659, %v654
    %v674 = vadd.f32 %v659, %v656
    %v675 = vadd.f32 %v659, %v658
    %v692 = vlaneseq
    %v693 = vand.u32 %v692, 127
    %v694 = vlaneseq
    %v695 = vshrl.u32 %v694, 7
    %v696 = vsub.s32 %v693, %v695
    %v697 = vrot.slane %v660, %v696
    %v698 = vadd.s32 %v693, 4294967288
    %v699 = vlaneseq
    %v700 = vshrl.u32 %v699, 7
    %v701 = vsub.s32 %v698, %v700
    %v702 = vrot.slane %v661, %v701
    %vm703 = vcmask 130112
    %v704 = vsel %vm703, %v702, %v697
    %v705 = vadd.s32 %v693, 4294967280
    %v706 = vlaneseq
    %v707 = vshrl.u32 %v706, 7
    %v708 = vsub.s32 %v705, %v707
    %v709 = vrot.slane %v662, %v708
    %vm710 = vcmask 195712
    %v711 = vsel %vm710, %v709, %v704
    %v712 = vadd.s32 %v693, 4294967272
    %v713 = vlaneseq
    %v714 = vshrl.u32 %v713, 7
    %v715 = vsub.s32 %v712, %v714
    %v716 = vrot.slane %v663, %v715
    %vm717 = vcmask 261312
    %v718 = vsel %vm717, %v716, %v711
    %v719 = vadd.s32 %v693, 4294967264
    %v720 = vlaneseq
    %v721 = vshrl.u32 %v720, 7
    %v722 = vsub.s32 %v719, %v721
    %v723 = vrot.slane %v664, %v722
    %vm724 = vcmask 326912
    %v725 = vsel %vm724, %v723, %v718
    %v726 = vadd.s32 %v693, 4294967256
    %v727 = vlaneseq
    %v728 = vshrl.u32 %v727, 7
    %v729 = vsub.s32 %v726, %v728
    %v730 = vrot.slane %v665, %v729
    %vm731 = vcmask 392512
    %v732 = vsel %vm731, %v730, %v725
    %v733 = vadd.s32 %v693, 4294967248
    %v734 = vlaneseq
    %v735 = vshrl.u32 %v734, 7
    %v736 = vsub.s32 %v733, %v735
    %v737 = vrot.slane %v666, %v736
    %vm738 = vcmask 458112
    %v739 = vsel %vm738, %v737, %v732
    %v740 = vadd.s32 %v693, 4294967240
    %v741 = vlaneseq
    %v742 = vshrl.u32 %v741, 7
    %v743 = vsub.s32 %v740, %v742
    %v744 = vrot.slane %v667, %v743
    %vm745 = vcmask 523712
    %v746 = vsel %vm745, %v744, %v739
    %v747 = vadd.s32 %v693, 4294967232
    %v748 = vlaneseq
    %v749 = vshrl.u32 %v748, 7
    %v750 = vsub.s32 %v747, %v749
    %v751 = vrot.slane %v668, %v750
    %vm752 = vcmask 589312
    %v753 = vsel %vm752, %v751, %v746
    %v754 = vadd.s32 %v693, 4294967224
    %v755 = vlaneseq
    %v756 = vshrl.u32 %v755, 7
    %v757 = vsub.s32 %v754, %v756
    %v758 = vrot.slane %v669, %v757
    %vm759 = vcmask 654912
    %v760 = vsel %vm759, %v758, %v753
    %v761 = vadd.s32 %v693, 4294967216
    %v762 = vlaneseq
    %v763 = vshrl.u32 %v762, 7
    %v764 = vsub.s32 %v761, %v763
    %v765 = vrot.slane %v670, %v764
    %vm766 = vcmask 720512
    %v767 = vsel %vm766, %v765, %v760
    %v768 = vadd.s32 %v693, 4294967208
    %v769 = vlaneseq
    %v770 = vshrl.u32 %v769, 7
    %v771 = vsub.s32 %v768, %v770
    %v772 = vrot.slane %v671, %v771
    %vm773 = vcmask 786112
    %v774 = vsel %vm773, %v772, %v767
    %v775 = vadd.s32 %v693, 4294967200
    %v776 = vlaneseq
    %v777 = vshrl.u32 %v776, 7
    %v778 = vsub.s32 %v775, %v777
    %v779 = vrot.slane %v672, %v778
    %vm780 = vcmask 851712
    %v781 = vsel %vm780, %v779, %v774
    %v782 = vadd.s32 %v693, 4294967192
    %v783 = vlaneseq
    %v784 = vshrl.u32 %v783, 7
    %v785 = vsub.s32 %v782, %v784
    %v786 = vrot.slane %v673, %v785
    %vm787 = vcmask 917312
    %v788 = vsel %vm787, %v786, %v781
    %v789 = vadd.s32 %v693, 4294967184
    %v790 = vlaneseq
    %v791 = vshrl.u32 %v790, 7
    %v792 = vsub.s32 %v789, %v791
    %v793 = vrot.slane %v674, %v792
    %vm794 = vcmask 982912
    %v795 = vsel %vm794, %v793, %v788
    %v796 = vadd.s32 %v693, 4294967176
    %v797 = vlaneseq
    %v798 = vshrl.u32 %v797, 7
    %v799 = vsub.s32 %v796, %v798
    %v800 = vrot.slane %v675, %v799
    %vm801 = vcmask 1048512
    %v802 = vsel %vm801, %v800, %v795
    %804 = vst [vmem:[#allocation9] sm:$0x1] %v802
    // Predicated region
    $region156: #{tpu_custom_call.1} parent=1 // pred_check
      _
    $region157: #{tpu_custom_call.1} parent=1 // pred_check_branch
      %806 = sbr.rel (0) target = $region159
    $region158: #{tpu_custom_call.1} parent=1 // pred_region
      %s808 = ssub.s32 16, 16
      %809 = vsyncadd [#allocation10], %s808
      %s811 = sshll.u32 [#allocation9], 4
      %s812 = int_to_ptr.vmem [resolvable:$true] %s811
      %814 = dma.vmem_to_hbm [thread:$0]  %s812, 16, %s5, [#allocation10]
    $region159: #{tpu_custom_call.1} parent=1 // pred_fallthru
      _
    // Predicated region
    $region160: #{tpu_custom_call.1} parent=1 // pred_check
      _
    $region161: #{tpu_custom_call.1} parent=1 // pred_check_branch
      %816 = sbr.rel (0) target = $region163
    $region162: #{tpu_custom_call.1} parent=1 // pred_region
      %817 = dma.done [#allocation10], 16
    $region163: #{tpu_custom_call.1} parent=1 // pred_fallthru
      _
    %818 = vsyncpa [#allocation10], 1
  %819 = vsyncmov [#allocation4]
  %s820 = vpop.sfrf %819
  %p821 = scmp.eq.s32.totalorder %s820, 0
  %p822 = pneg %p821
  %824 = shalt.err (%p822)
  %s825 = scalar_lea.sflag [#allocation4], 1
  %826 = vsyncmov %s825
  %s827 = vpop.sfrf %826
  %p828 = scmp.eq.s32.totalorder %s827, 0
  %p829 = pneg %p828
  %831 = shalt.err (%p829)
  %s832 = scalar_lea.sflag [#allocation4], 2
  %833 = vsyncmov %s832
  %s834 = vpop.sfrf %833
  %p835 = scmp.eq.s32.totalorder %s834, 0
  %p836 = pneg %p835
  %838 = shalt.err (%p836)
  %s839 = scalar_lea.sflag [#allocation4], 3
  %840 = vsyncmov %s839
  %s841 = vpop.sfrf %840
  %p842 = scmp.eq.s32.totalorder %s841, 0
  %p843 = pneg %p842
  %845 = shalt.err (%p843)

</llo_original>
